<compile_context>
chip_gen: v7x
topology: tpu7x:2x2x1
jax: 0.10.0
libtpu: 0.0.40
codegen_flags: <defaults>
</compile_context>

<pallas_src>
import jax
import jax.numpy as jnp
from jax.experimental import pallas as pl
from jax.experimental.pallas import tpu as pltpu

# ------------------------- configuration (small) -----------------------------
B = 2          # batch
SEQ_LEN = 8    # configs.seq_len
PRED_LEN = 8   # configs.pred_len
DEC_IN = 4     # configs.dec_in
D_MODEL = 32   # configs.d_model
BPAD = 8       # batch rows padded to one full sublane group


# ------------------------------- kernel --------------------------------------
def model_lstm_kernel(
    x_enc_ref,    # [S*BPAD, 8]   time-major, batch padded to 8, col D = 1.0 (bias)
    xy_ref,       # [BPAD, 56]    concat(x_t, y_t) flattened, batch padded
    lstm_ref,     # [40, 128]     rows 0:D = W_ih^T*s, row D = (b_ih+b_hh)*s,
                  #               rows 8:40 = W_hh^T*s   (s = 0.5 on i/f/o cols)
    epi16_ref,    # [96, 16]      rows 0:56 w_xy, 56:88 w_hp, 88:96 b_xy (bcast)
    epi32_ref,    # [24, 32]      rows 0:16 W2^T, 16:24 b2 (bcast)
    epi8_ref,     # [40, 8]       rows 0:32 W4^T, 32:40 b4 (bcast)
    out_ref,      # [B, P]
):
    BP = xy_ref.shape[0]                 # 8 (padded batch / sublane group)
    H = lstm_ref.shape[1] // 4           # 32
    S = x_enc_ref.shape[0] // BP         # 8
    P = out_ref.shape[1]                 # 8
    Bk = out_ref.shape[0]                # 2

    w_ihb = lstm_ref[0:BP, :]            # [8, 128]  (W_ih^T rows + bias row)
    w_hh = lstm_ref[BP:BP + H, :]        # [32, 128]

    # Hoisted input projection (+ fused LSTM bias via the ones column):
    # one MXU push, entirely off the serial recurrence chain.
    x_gates = jnp.dot(x_enc_ref[...], w_ihb,
                      preferred_element_type=jnp.float32)   # [S*8, 128]

    # ---- LSTM recurrence, fully unrolled, h/c carried in vregs --------------
    h = jnp.zeros((BP, H), jnp.float32)
    c = jnp.zeros((BP, H), jnp.float32)
    half = jnp.float32(0.5)
    for t in range(S):
        gates = x_gates[t * BP:(t + 1) * BP, :] + jnp.dot(
            h, w_hh, preferred_element_type=jnp.float32)     # [8, 128] = 1 vreg
        th = jnp.tanh(gates)             # single EUP pass per step
        # sigmoid(x) = 0.5*(tanh(x/2)+1); i/f/o columns were pre-scaled by 0.5
        i_g = half * th[:, 0 * H:1 * H] + half
        f_g = half * th[:, 1 * H:2 * H] + half
        g_g = th[:, 2 * H:3 * H]
        o_g = half * th[:, 3 * H:4 * H] + half
        c = f_g * c + i_g * g_g
        h = o_g * jnp.tanh(c)            # second EUP pass per step

    # ---- epilogue: projector folded into the fused fc1/fc3 block-diag matmul
    w_xy = epi16_ref[0:7 * P, :]                       # [56, 16]
    w_hp = epi16_ref[7 * P:7 * P + H, :]               # [32, 16]
    b_xy = epi16_ref[7 * P + H:7 * P + H + BP, :]      # [8, 16] pre-broadcast
    w2 = epi32_ref[0:2 * P, :]                         # [16, 32]
    b2 = epi32_ref[2 * P:2 * P + BP, :]                # [8, 32] pre-broadcast
    w4 = epi8_ref[0:H, :]                              # [32, 8]
    b4 = epi8_ref[H:H + BP, :]                         # [8, 8]  pre-broadcast

    xy1 = (jnp.dot(xy_ref[...], w_xy, preferred_element_type=jnp.float32)
           + jnp.dot(h, w_hp, preferred_element_type=jnp.float32)
           + b_xy)
    xy1 = jnp.maximum(xy1, 0.0)                                      # ReLU
    x2 = jnp.maximum(
        jnp.dot(xy1, w2, preferred_element_type=jnp.float32) + b2, 0.0)
    res = jnp.dot(x2, w4, preferred_element_type=jnp.float32) + b4   # [8, 8]
    out_ref[...] = res[:Bk, :]


# ---------------------- one-time weight repacking (init) ----------------------
def prepare_params(params):
    (W_ih, W_hh, b_ih, b_hh,
     W_proj, b_proj, W1, b1, W2, b2, W3, b3, W4, b4) = params
    H, P, D = D_MODEL, PRED_LEN, DEC_IN

    # sigmoid-via-tanh: pre-scale i/f/o gate columns by 0.5 (g columns by 1.0)
    scale = jnp.concatenate([jnp.full((H,), 0.5), jnp.full((H,), 0.5),
                             jnp.ones((H,)), jnp.full((H,), 0.5)]
                            ).astype(jnp.float32)                   # [4H]
    w_ih_t = W_ih.T * scale[None, :]                                # [D, 4H]
    w_hh_t = W_hh.T * scale[None, :]                                # [H, 4H]
    b_lstm = (b_ih + b_hh) * scale                                  # [4H]

    # LSTM slab [40, 128]: padded W_ih^T (with bias row at row D) + W_hh^T
    lstm_slab = jnp.zeros((BPAD + H, 4 * H), jnp.float32)
    lstm_slab = lstm_slab.at[:D, :].set(w_ih_t)
    lstm_slab = lstm_slab.at[D, :].set(b_lstm)
    lstm_slab = lstm_slab.at[BPAD:, :].set(w_hh_t)

    # fc1 split: column c = p*D + j ; j < D-1 -> x_t part, j == D-1 -> projector
    W1_r = W1.reshape(P, P, D)
    W1_xt_t = W1_r[:, :, :D - 1].reshape(P, P * (D - 1)).T          # [24, 8]
    W1_out_t = W1_r[:, :, D - 1].T                                  # [8, 8]

    n_xt = P * (D - 1)                                              # 24
    n_xy = n_xt + 4 * P                                             # 56
    w_xy = jnp.zeros((n_xy, 2 * P), jnp.float32)
    w_xy = w_xy.at[:n_xt, :P].set(W1_xt_t)                          # fc1 (x_t)
    w_xy = w_xy.at[n_xt:, P:].set(W3.T)                             # fc3

    # fold projector into the epilogue
    w1out_pad = jnp.zeros((P, 2 * P), jnp.float32).at[:, :P].set(W1_out_t)
    w_hp = W_proj.T @ w1out_pad                                     # [H, 2P]
    b_xy = jnp.concatenate([b1, b3]) + b_proj @ w1out_pad           # [2P]

    # epilogue slabs (lane-homogeneous, 8-aligned sublane blocks, biases
    # pre-broadcast to the padded batch of 8 rows)
    epi16 = jnp.zeros((n_xy + H + BPAD, 2 * P), jnp.float32)        # [96, 16]
    epi16 = epi16.at[:n_xy, :].set(w_xy)
    epi16 = epi16.at[n_xy:n_xy + H, :].set(w_hp)
    epi16 = epi16.at[n_xy + H:, :].set(jnp.broadcast_to(b_xy, (BPAD, 2 * P)))

    epi32 = jnp.zeros((2 * P + BPAD, H), jnp.float32)               # [24, 32]
    epi32 = epi32.at[:2 * P, :].set(W2.T)
    epi32 = epi32.at[2 * P:, :].set(jnp.broadcast_to(b2, (BPAD, H)))

    epi8 = jnp.zeros((H + BPAD, P), jnp.float32)                    # [40, 8]
    epi8 = epi8.at[:H, :].set(W4.T)
    epi8 = epi8.at[H:, :].set(jnp.broadcast_to(b4, (BPAD, P)))

    return (lstm_slab, epi16, epi32, epi8)


# ------------------------------- wrapper --------------------------------------
def model_lstm_forward(x_enc, x_t, y_t, prepared):
    lstm_slab, epi16, epi32, epi8 = prepared
    Bsz, S, D = x_enc.shape
    P = PRED_LEN

    # time-major, batch padded to 8 rows, features padded to 8 lanes; column D
    # carries 1.0 so the LSTM bias rides the hoisted input projection.
    x_tm = jnp.transpose(x_enc, (1, 0, 2))                          # [S, B, D]
    x_aug = jnp.zeros((S, BPAD, 8), jnp.float32)
    x_aug = x_aug.at[:, :Bsz, :D].set(x_tm.astype(jnp.float32))
    x_aug = x_aug.at[:, :Bsz, D].set(1.0)
    x_aug = x_aug.reshape(S * BPAD, 8)

    xy = jnp.concatenate([x_t.reshape(Bsz, -1), y_t.reshape(Bsz, -1)],
                         axis=-1).astype(jnp.float32)               # [B, 56]
    xy_pad = jnp.zeros((BPAD, xy.shape[1]), jnp.float32).at[:Bsz, :].set(xy)

    vmem = pl.BlockSpec(memory_space=pltpu.MemorySpace.VMEM)
    return pl.pallas_call(
        model_lstm_kernel,
        out_shape=jax.ShapeDtypeStruct((Bsz, P), jnp.float32),
        in_specs=[vmem] * 6,
        out_specs=vmem,
    )(x_aug, xy_pad, lstm_slab, epi16, epi32, epi8)


model_lstm_forward_jit = jax.jit(model_lstm_forward)


# ------------------------- pure-JAX reference (for checking) ------------------
def reference_forward(x_enc, x_t, y_t, params):
    (W_ih, W_hh, b_ih, b_hh,
     W_proj, b_proj, W1, b1, W2, b2, W3, b3, W4, b4) = params
    H = D_MODEL
    h = jnp.zeros((B, H), jnp.float32)
    c = jnp.zeros((B, H), jnp.float32)
    for t in range(SEQ_LEN):
        gates = x_enc[:, t, :] @ W_ih.T + h @ W_hh.T + b_ih + b_hh
        i = jax.nn.sigmoid(gates[:, :H])
        f = jax.nn.sigmoid(gates[:, H:2 * H])
        g = jnp.tanh(gates[:, 2 * H:3 * H])
        o = jax.nn.sigmoid(gates[:, 3 * H:])
        c = f * c + i * g
        h = o * jnp.tanh(c)
    dec = h @ W_proj.T + b_proj                                   # [B, P]
    merged = jnp.concatenate([x_t, dec[..., None]], axis=-1)      # [B, P, D]
    x = merged.reshape(B, -1) @ W1.T + b1
    x = jnp.maximum(x, 0.0)
    y = y_t.reshape(B, -1) @ W3.T + b3
    y = jnp.maximum(y, 0.0)
    x = jnp.concatenate([x, y], axis=-1) @ W2.T + b2
    x = jnp.maximum(x, 0.0)
    return x @ W4.T + b4


# ---------------------------------- main --------------------------------------
if __name__ == "__main__":
    key = jax.random.PRNGKey(0)
    keys = jax.random.split(key, 20)

    H, P, D, S = D_MODEL, PRED_LEN, DEC_IN, SEQ_LEN

    # deterministic synthetic parameters (torch nn.LSTM / nn.Linear shapes)
    W_ih = 0.1 * jax.random.normal(keys[0], (4 * H, D), jnp.float32)
    W_hh = 0.1 * jax.random.normal(keys[1], (4 * H, H), jnp.float32)
    b_ih = 0.1 * jax.random.normal(keys[2], (4 * H,), jnp.float32)
    b_hh = 0.1 * jax.random.normal(keys[3], (4 * H,), jnp.float32)
    W_proj = 0.1 * jax.random.normal(keys[4], (P, H), jnp.float32)
    b_proj = 0.1 * jax.random.normal(keys[5], (P,), jnp.float32)
    W1 = 0.1 * jax.random.normal(keys[6], (P, P * D), jnp.float32)
    b1 = 0.1 * jax.random.normal(keys[7], (P,), jnp.float32)
    W2 = 0.1 * jax.random.normal(keys[8], (H, 2 * P), jnp.float32)
    b2 = 0.1 * jax.random.normal(keys[9], (H,), jnp.float32)
    W3 = 0.1 * jax.random.normal(keys[10], (P, 4 * P), jnp.float32)
    b3 = 0.1 * jax.random.normal(keys[11], (P,), jnp.float32)
    W4 = 0.1 * jax.random.normal(keys[12], (P, H), jnp.float32)
    b4 = 0.1 * jax.random.normal(keys[13], (P,), jnp.float32)
    params = (W_ih, W_hh, b_ih, b_hh, W_proj, b_proj,
              W1, b1, W2, b2, W3, b3, W4, b4)

    # inputs (x_mark_enc / x_dec / x_mark_dec are unused in the torch forward)
    x_enc = jax.random.normal(keys[14], (B, S, D), jnp.float32)
    x_t = jax.random.normal(keys[15], (B, P, D - 1), jnp.float32)
    y_t = jax.random.normal(keys[16], (B, P, 4), jnp.float32)

    # one-time weight repacking ("model init")
    prepared = jax.block_until_ready(prepare_params(params))

    out = model_lstm_forward_jit(x_enc, x_t, y_t, prepared)
    out = jax.block_until_ready(out)

    ref = reference_forward(x_enc, x_t, y_t, params)
    assert out.shape == (B, P)
    assert jnp.allclose(out, ref, atol=1e-4, rtol=1e-4), "mismatch vs reference"

    print("KERNEL_OK")
</pallas_src>

<mosaic_0001>
module attributes {stable_mosaic.version = 11 : i64} {
  func.func @model_lstm_kernel(%arg0: memref<64x8xf32, #tpu.memory_space<vmem>>, %arg1: memref<8x56xf32, #tpu.memory_space<vmem>>, %arg2: memref<40x128xf32, #tpu.memory_space<vmem>>, %arg3: memref<96x16xf32, #tpu.memory_space<vmem>>, %arg4: memref<24x32xf32, #tpu.memory_space<vmem>>, %arg5: memref<40x8xf32, #tpu.memory_space<vmem>>, %arg6: memref<2x8xf32, #tpu.memory_space<vmem>>) attributes {dimension_semantics = [], scalar_prefetch = 0 : i64, scratch_operands = 0 : i64, tpu.core_type = #tpu.core_type<tc>} {
    %c0 = arith.constant 0 : index
    %c0_0 = arith.constant 0 : index
    %0 = vector.load %arg2[%c0, %c0_0] : memref<40x128xf32, #tpu.memory_space<vmem>>, vector<8x128xf32>
    %c8 = arith.constant 8 : index
    %c0_1 = arith.constant 0 : index
    %1 = vector.load %arg2[%c8, %c0_1] : memref<40x128xf32, #tpu.memory_space<vmem>>, vector<32x128xf32>
    %c0_2 = arith.constant 0 : index
    %c0_3 = arith.constant 0 : index
    %2 = vector.load %arg0[%c0_2, %c0_3] : memref<64x8xf32, #tpu.memory_space<vmem>>, vector<64x8xf32>
    %cst = arith.constant dense<0.000000e+00> : vector<64x128xf32>
    %3 = tpu.matmul %2, %0, %cst {dimension_numbers = #tpu.dot_dimension_numbers<[1], [0], [0], [1], [0, 0, 1, 1], [], []>} : vector<64x8xf32>, vector<8x128xf32>, vector<64x128xf32> -> vector<64x128xf32>
    %cst_4 = arith.constant 0.000000e+00 : f32
    %4 = vector.broadcast %cst_4 : f32 to vector<8x32xf32>
    %cst_5 = arith.constant 0.000000e+00 : f32
    %5 = vector.broadcast %cst_5 : f32 to vector<8x32xf32>
    %6 = vector.extract_strided_slice %3 {offsets = [0, 0], sizes = [8, 128], strides = [1, 1]} : vector<64x128xf32> to vector<8x128xf32>
    %cst_6 = arith.constant dense<0.000000e+00> : vector<8x128xf32>
    %7 = tpu.matmul %4, %1, %cst_6 {dimension_numbers = #tpu.dot_dimension_numbers<[1], [0], [0], [1], [0, 0, 1, 1], [], []>} : vector<8x32xf32>, vector<32x128xf32>, vector<8x128xf32> -> vector<8x128xf32>
    %8 = arith.addf %6, %7 : vector<8x128xf32>
    %9 = math.tanh %8 : vector<8x128xf32>
    %10 = vector.extract_strided_slice %9 {offsets = [0, 0], sizes = [8, 32], strides = [1, 1]} : vector<8x128xf32> to vector<8x32xf32>
    %cst_7 = arith.constant 5.000000e-01 : f32
    %11 = vector.broadcast %cst_7 : f32 to vector<8x32xf32>
    %12 = arith.mulf %11, %10 : vector<8x32xf32>
    %cst_8 = arith.constant 5.000000e-01 : f32
    %13 = vector.broadcast %cst_8 : f32 to vector<8x32xf32>
    %14 = arith.addf %12, %13 : vector<8x32xf32>
    %15 = vector.extract_strided_slice %9 {offsets = [0, 32], sizes = [8, 32], strides = [1, 1]} : vector<8x128xf32> to vector<8x32xf32>
    %cst_9 = arith.constant 5.000000e-01 : f32
    %16 = vector.broadcast %cst_9 : f32 to vector<8x32xf32>
    %17 = arith.mulf %16, %15 : vector<8x32xf32>
    %cst_10 = arith.constant 5.000000e-01 : f32
    %18 = vector.broadcast %cst_10 : f32 to vector<8x32xf32>
    %19 = arith.addf %17, %18 : vector<8x32xf32>
    %20 = vector.extract_strided_slice %9 {offsets = [0, 64], sizes = [8, 32], strides = [1, 1]} : vector<8x128xf32> to vector<8x32xf32>
    %21 = vector.extract_strided_slice %9 {offsets = [0, 96], sizes = [8, 32], strides = [1, 1]} : vector<8x128xf32> to vector<8x32xf32>
    %cst_11 = arith.constant 5.000000e-01 : f32
    %22 = vector.broadcast %cst_11 : f32 to vector<8x32xf32>
    %23 = arith.mulf %22, %21 : vector<8x32xf32>
    %cst_12 = arith.constant 5.000000e-01 : f32
    %24 = vector.broadcast %cst_12 : f32 to vector<8x32xf32>
    %25 = arith.addf %23, %24 : vector<8x32xf32>
    %26 = arith.mulf %19, %5 : vector<8x32xf32>
    %27 = arith.mulf %14, %20 : vector<8x32xf32>
    %28 = arith.addf %26, %27 : vector<8x32xf32>
    %29 = math.tanh %28 : vector<8x32xf32>
    %30 = arith.mulf %25, %29 : vector<8x32xf32>
    %31 = vector.extract_strided_slice %3 {offsets = [8, 0], sizes = [8, 128], strides = [1, 1]} : vector<64x128xf32> to vector<8x128xf32>
    %cst_13 = arith.constant dense<0.000000e+00> : vector<8x128xf32>
    %32 = tpu.matmul %30, %1, %cst_13 {dimension_numbers = #tpu.dot_dimension_numbers<[1], [0], [0], [1], [0, 0, 1, 1], [], []>} : vector<8x32xf32>, vector<32x128xf32>, vector<8x128xf32> -> vector<8x128xf32>
    %33 = arith.addf %31, %32 : vector<8x128xf32>
    %34 = math.tanh %33 : vector<8x128xf32>
    %35 = vector.extract_strided_slice %34 {offsets = [0, 0], sizes = [8, 32], strides = [1, 1]} : vector<8x128xf32> to vector<8x32xf32>
    %cst_14 = arith.constant 5.000000e-01 : f32
    %36 = vector.broadcast %cst_14 : f32 to vector<8x32xf32>
    %37 = arith.mulf %36, %35 : vector<8x32xf32>
    %cst_15 = arith.constant 5.000000e-01 : f32
    %38 = vector.broadcast %cst_15 : f32 to vector<8x32xf32>
    %39 = arith.addf %37, %38 : vector<8x32xf32>
    %40 = vector.extract_strided_slice %34 {offsets = [0, 32], sizes = [8, 32], strides = [1, 1]} : vector<8x128xf32> to vector<8x32xf32>
    %cst_16 = arith.constant 5.000000e-01 : f32
    %41 = vector.broadcast %cst_16 : f32 to vector<8x32xf32>
    %42 = arith.mulf %41, %40 : vector<8x32xf32>
    %cst_17 = arith.constant 5.000000e-01 : f32
    %43 = vector.broadcast %cst_17 : f32 to vector<8x32xf32>
    %44 = arith.addf %42, %43 : vector<8x32xf32>
    %45 = vector.extract_strided_slice %34 {offsets = [0, 64], sizes = [8, 32], strides = [1, 1]} : vector<8x128xf32> to vector<8x32xf32>
    %46 = vector.extract_strided_slice %34 {offsets = [0, 96], sizes = [8, 32], strides = [1, 1]} : vector<8x128xf32> to vector<8x32xf32>
    %cst_18 = arith.constant 5.000000e-01 : f32
    %47 = vector.broadcast %cst_18 : f32 to vector<8x32xf32>
    %48 = arith.mulf %47, %46 : vector<8x32xf32>
    %cst_19 = arith.constant 5.000000e-01 : f32
    %49 = vector.broadcast %cst_19 : f32 to vector<8x32xf32>
    %50 = arith.addf %48, %49 : vector<8x32xf32>
    %51 = arith.mulf %44, %28 : vector<8x32xf32>
    %52 = arith.mulf %39, %45 : vector<8x32xf32>
    %53 = arith.addf %51, %52 : vector<8x32xf32>
    %54 = math.tanh %53 : vector<8x32xf32>
    %55 = arith.mulf %50, %54 : vector<8x32xf32>
    %56 = vector.extract_strided_slice %3 {offsets = [16, 0], sizes = [8, 128], strides = [1, 1]} : vector<64x128xf32> to vector<8x128xf32>
    %cst_20 = arith.constant dense<0.000000e+00> : vector<8x128xf32>
    %57 = tpu.matmul %55, %1, %cst_20 {dimension_numbers = #tpu.dot_dimension_numbers<[1], [0], [0], [1], [0, 0, 1, 1], [], []>} : vector<8x32xf32>, vector<32x128xf32>, vector<8x128xf32> -> vector<8x128xf32>
    %58 = arith.addf %56, %57 : vector<8x128xf32>
    %59 = math.tanh %58 : vector<8x128xf32>
    %60 = vector.extract_strided_slice %59 {offsets = [0, 0], sizes = [8, 32], strides = [1, 1]} : vector<8x128xf32> to vector<8x32xf32>
    %cst_21 = arith.constant 5.000000e-01 : f32
    %61 = vector.broadcast %cst_21 : f32 to vector<8x32xf32>
    %62 = arith.mulf %61, %60 : vector<8x32xf32>
    %cst_22 = arith.constant 5.000000e-01 : f32
    %63 = vector.broadcast %cst_22 : f32 to vector<8x32xf32>
    %64 = arith.addf %62, %63 : vector<8x32xf32>
    %65 = vector.extract_strided_slice %59 {offsets = [0, 32], sizes = [8, 32], strides = [1, 1]} : vector<8x128xf32> to vector<8x32xf32>
    %cst_23 = arith.constant 5.000000e-01 : f32
    %66 = vector.broadcast %cst_23 : f32 to vector<8x32xf32>
    %67 = arith.mulf %66, %65 : vector<8x32xf32>
    %cst_24 = arith.constant 5.000000e-01 : f32
    %68 = vector.broadcast %cst_24 : f32 to vector<8x32xf32>
    %69 = arith.addf %67, %68 : vector<8x32xf32>
    %70 = vector.extract_strided_slice %59 {offsets = [0, 64], sizes = [8, 32], strides = [1, 1]} : vector<8x128xf32> to vector<8x32xf32>
    %71 = vector.extract_strided_slice %59 {offsets = [0, 96], sizes = [8, 32], strides = [1, 1]} : vector<8x128xf32> to vector<8x32xf32>
    %cst_25 = arith.constant 5.000000e-01 : f32
    %72 = vector.broadcast %cst_25 : f32 to vector<8x32xf32>
    %73 = arith.mulf %72, %71 : vector<8x32xf32>
    %cst_26 = arith.constant 5.000000e-01 : f32
    %74 = vector.broadcast %cst_26 : f32 to vector<8x32xf32>
    %75 = arith.addf %73, %74 : vector<8x32xf32>
    %76 = arith.mulf %69, %53 : vector<8x32xf32>
    %77 = arith.mulf %64, %70 : vector<8x32xf32>
    %78 = arith.addf %76, %77 : vector<8x32xf32>
    %79 = math.tanh %78 : vector<8x32xf32>
    %80 = arith.mulf %75, %79 : vector<8x32xf32>
    %81 = vector.extract_strided_slice %3 {offsets = [24, 0], sizes = [8, 128], strides = [1, 1]} : vector<64x128xf32> to vector<8x128xf32>
    %cst_27 = arith.constant dense<0.000000e+00> : vector<8x128xf32>
    %82 = tpu.matmul %80, %1, %cst_27 {dimension_numbers = #tpu.dot_dimension_numbers<[1], [0], [0], [1], [0, 0, 1, 1], [], []>} : vector<8x32xf32>, vector<32x128xf32>, vector<8x128xf32> -> vector<8x128xf32>
    %83 = arith.addf %81, %82 : vector<8x128xf32>
    %84 = math.tanh %83 : vector<8x128xf32>
    %85 = vector.extract_strided_slice %84 {offsets = [0, 0], sizes = [8, 32], strides = [1, 1]} : vector<8x128xf32> to vector<8x32xf32>
    %cst_28 = arith.constant 5.000000e-01 : f32
    %86 = vector.broadcast %cst_28 : f32 to vector<8x32xf32>
    %87 = arith.mulf %86, %85 : vector<8x32xf32>
    %cst_29 = arith.constant 5.000000e-01 : f32
    %88 = vector.broadcast %cst_29 : f32 to vector<8x32xf32>
    %89 = arith.addf %87, %88 : vector<8x32xf32>
    %90 = vector.extract_strided_slice %84 {offsets = [0, 32], sizes = [8, 32], strides = [1, 1]} : vector<8x128xf32> to vector<8x32xf32>
    %cst_30 = arith.constant 5.000000e-01 : f32
    %91 = vector.broadcast %cst_30 : f32 to vector<8x32xf32>
    %92 = arith.mulf %91, %90 : vector<8x32xf32>
    %cst_31 = arith.constant 5.000000e-01 : f32
    %93 = vector.broadcast %cst_31 : f32 to vector<8x32xf32>
    %94 = arith.addf %92, %93 : vector<8x32xf32>
    %95 = vector.extract_strided_slice %84 {offsets = [0, 64], sizes = [8, 32], strides = [1, 1]} : vector<8x128xf32> to vector<8x32xf32>
    %96 = vector.extract_strided_slice %84 {offsets = [0, 96], sizes = [8, 32], strides = [1, 1]} : vector<8x128xf32> to vector<8x32xf32>
    %cst_32 = arith.constant 5.000000e-01 : f32
    %97 = vector.broadcast %cst_32 : f32 to vector<8x32xf32>
    %98 = arith.mulf %97, %96 : vector<8x32xf32>
    %cst_33 = arith.constant 5.000000e-01 : f32
    %99 = vector.broadcast %cst_33 : f32 to vector<8x32xf32>
    %100 = arith.addf %98, %99 : vector<8x32xf32>
    %101 = arith.mulf %94, %78 : vector<8x32xf32>
    %102 = arith.mulf %89, %95 : vector<8x32xf32>
    %103 = arith.addf %101, %102 : vector<8x32xf32>
    %104 = math.tanh %103 : vector<8x32xf32>
    %105 = arith.mulf %100, %104 : vector<8x32xf32>
    %106 = vector.extract_strided_slice %3 {offsets = [32, 0], sizes = [8, 128], strides = [1, 1]} : vector<64x128xf32> to vector<8x128xf32>
    %cst_34 = arith.constant dense<0.000000e+00> : vector<8x128xf32>
    %107 = tpu.matmul %105, %1, %cst_34 {dimension_numbers = #tpu.dot_dimension_numbers<[1], [0], [0], [1], [0, 0, 1, 1], [], []>} : vector<8x32xf32>, vector<32x128xf32>, vector<8x128xf32> -> vector<8x128xf32>
    %108 = arith.addf %106, %107 : vector<8x128xf32>
    %109 = math.tanh %108 : vector<8x128xf32>
    %110 = vector.extract_strided_slice %109 {offsets = [0, 0], sizes = [8, 32], strides = [1, 1]} : vector<8x128xf32> to vector<8x32xf32>
    %cst_35 = arith.constant 5.000000e-01 : f32
    %111 = vector.broadcast %cst_35 : f32 to vector<8x32xf32>
    %112 = arith.mulf %111, %110 : vector<8x32xf32>
    %cst_36 = arith.constant 5.000000e-01 : f32
    %113 = vector.broadcast %cst_36 : f32 to vector<8x32xf32>
    %114 = arith.addf %112, %113 : vector<8x32xf32>
    %115 = vector.extract_strided_slice %109 {offsets = [0, 32], sizes = [8, 32], strides = [1, 1]} : vector<8x128xf32> to vector<8x32xf32>
    %cst_37 = arith.constant 5.000000e-01 : f32
    %116 = vector.broadcast %cst_37 : f32 to vector<8x32xf32>
    %117 = arith.mulf %116, %115 : vector<8x32xf32>
    %cst_38 = arith.constant 5.000000e-01 : f32
    %118 = vector.broadcast %cst_38 : f32 to vector<8x32xf32>
    %119 = arith.addf %117, %118 : vector<8x32xf32>
    %120 = vector.extract_strided_slice %109 {offsets = [0, 64], sizes = [8, 32], strides = [1, 1]} : vector<8x128xf32> to vector<8x32xf32>
    %121 = vector.extract_strided_slice %109 {offsets = [0, 96], sizes = [8, 32], strides = [1, 1]} : vector<8x128xf32> to vector<8x32xf32>
    %cst_39 = arith.constant 5.000000e-01 : f32
    %122 = vector.broadcast %cst_39 : f32 to vector<8x32xf32>
    %123 = arith.mulf %122, %121 : vector<8x32xf32>
    %cst_40 = arith.constant 5.000000e-01 : f32
    %124 = vector.broadcast %cst_40 : f32 to vector<8x32xf32>
    %125 = arith.addf %123, %124 : vector<8x32xf32>
    %126 = arith.mulf %119, %103 : vector<8x32xf32>
    %127 = arith.mulf %114, %120 : vector<8x32xf32>
    %128 = arith.addf %126, %127 : vector<8x32xf32>
    %129 = math.tanh %128 : vector<8x32xf32>
    %130 = arith.mulf %125, %129 : vector<8x32xf32>
    %131 = vector.extract_strided_slice %3 {offsets = [40, 0], sizes = [8, 128], strides = [1, 1]} : vector<64x128xf32> to vector<8x128xf32>
    %cst_41 = arith.constant dense<0.000000e+00> : vector<8x128xf32>
    %132 = tpu.matmul %130, %1, %cst_41 {dimension_numbers = #tpu.dot_dimension_numbers<[1], [0], [0], [1], [0, 0, 1, 1], [], []>} : vector<8x32xf32>, vector<32x128xf32>, vector<8x128xf32> -> vector<8x128xf32>
    %133 = arith.addf %131, %132 : vector<8x128xf32>
    %134 = math.tanh %133 : vector<8x128xf32>
    %135 = vector.extract_strided_slice %134 {offsets = [0, 0], sizes = [8, 32], strides = [1, 1]} : vector<8x128xf32> to vector<8x32xf32>
    %cst_42 = arith.constant 5.000000e-01 : f32
    %136 = vector.broadcast %cst_42 : f32 to vector<8x32xf32>
    %137 = arith.mulf %136, %135 : vector<8x32xf32>
    %cst_43 = arith.constant 5.000000e-01 : f32
    %138 = vector.broadcast %cst_43 : f32 to vector<8x32xf32>
    %139 = arith.addf %137, %138 : vector<8x32xf32>
    %140 = vector.extract_strided_slice %134 {offsets = [0, 32], sizes = [8, 32], strides = [1, 1]} : vector<8x128xf32> to vector<8x32xf32>
    %cst_44 = arith.constant 5.000000e-01 : f32
    %141 = vector.broadcast %cst_44 : f32 to vector<8x32xf32>
    %142 = arith.mulf %141, %140 : vector<8x32xf32>
    %cst_45 = arith.constant 5.000000e-01 : f32
    %143 = vector.broadcast %cst_45 : f32 to vector<8x32xf32>
    %144 = arith.addf %142, %143 : vector<8x32xf32>
    %145 = vector.extract_strided_slice %134 {offsets = [0, 64], sizes = [8, 32], strides = [1, 1]} : vector<8x128xf32> to vector<8x32xf32>
    %146 = vector.extract_strided_slice %134 {offsets = [0, 96], sizes = [8, 32], strides = [1, 1]} : vector<8x128xf32> to vector<8x32xf32>
    %cst_46 = arith.constant 5.000000e-01 : f32
    %147 = vector.broadcast %cst_46 : f32 to vector<8x32xf32>
    %148 = arith.mulf %147, %146 : vector<8x32xf32>
    %cst_47 = arith.constant 5.000000e-01 : f32
    %149 = vector.broadcast %cst_47 : f32 to vector<8x32xf32>
    %150 = arith.addf %148, %149 : vector<8x32xf32>
    %151 = arith.mulf %144, %128 : vector<8x32xf32>
    %152 = arith.mulf %139, %145 : vector<8x32xf32>
    %153 = arith.addf %151, %152 : vector<8x32xf32>
    %154 = math.tanh %153 : vector<8x32xf32>
    %155 = arith.mulf %150, %154 : vector<8x32xf32>
    %156 = vector.extract_strided_slice %3 {offsets = [48, 0], sizes = [8, 128], strides = [1, 1]} : vector<64x128xf32> to vector<8x128xf32>
    %cst_48 = arith.constant dense<0.000000e+00> : vector<8x128xf32>
    %157 = tpu.matmul %155, %1, %cst_48 {dimension_numbers = #tpu.dot_dimension_numbers<[1], [0], [0], [1], [0, 0, 1, 1], [], []>} : vector<8x32xf32>, vector<32x128xf32>, vector<8x128xf32> -> vector<8x128xf32>
    %158 = arith.addf %156, %157 : vector<8x128xf32>
    %159 = math.tanh %158 : vector<8x128xf32>
    %160 = vector.extract_strided_slice %159 {offsets = [0, 0], sizes = [8, 32], strides = [1, 1]} : vector<8x128xf32> to vector<8x32xf32>
    %cst_49 = arith.constant 5.000000e-01 : f32
    %161 = vector.broadcast %cst_49 : f32 to vector<8x32xf32>
    %162 = arith.mulf %161, %160 : vector<8x32xf32>
    %cst_50 = arith.constant 5.000000e-01 : f32
    %163 = vector.broadcast %cst_50 : f32 to vector<8x32xf32>
    %164 = arith.addf %162, %163 : vector<8x32xf32>
    %165 = vector.extract_strided_slice %159 {offsets = [0, 32], sizes = [8, 32], strides = [1, 1]} : vector<8x128xf32> to vector<8x32xf32>
    %cst_51 = arith.constant 5.000000e-01 : f32
    %166 = vector.broadcast %cst_51 : f32 to vector<8x32xf32>
    %167 = arith.mulf %166, %165 : vector<8x32xf32>
    %cst_52 = arith.constant 5.000000e-01 : f32
    %168 = vector.broadcast %cst_52 : f32 to vector<8x32xf32>
    %169 = arith.addf %167, %168 : vector<8x32xf32>
    %170 = vector.extract_strided_slice %159 {offsets = [0, 64], sizes = [8, 32], strides = [1, 1]} : vector<8x128xf32> to vector<8x32xf32>
    %171 = vector.extract_strided_slice %159 {offsets = [0, 96], sizes = [8, 32], strides = [1, 1]} : vector<8x128xf32> to vector<8x32xf32>
    %cst_53 = arith.constant 5.000000e-01 : f32
    %172 = vector.broadcast %cst_53 : f32 to vector<8x32xf32>
    %173 = arith.mulf %172, %171 : vector<8x32xf32>
    %cst_54 = arith.constant 5.000000e-01 : f32
    %174 = vector.broadcast %cst_54 : f32 to vector<8x32xf32>
    %175 = arith.addf %173, %174 : vector<8x32xf32>
    %176 = arith.mulf %169, %153 : vector<8x32xf32>
    %177 = arith.mulf %164, %170 : vector<8x32xf32>
    %178 = arith.addf %176, %177 : vector<8x32xf32>
    %179 = math.tanh %178 : vector<8x32xf32>
    %180 = arith.mulf %175, %179 : vector<8x32xf32>
    %181 = vector.extract_strided_slice %3 {offsets = [56, 0], sizes = [8, 128], strides = [1, 1]} : vector<64x128xf32> to vector<8x128xf32>
    %cst_55 = arith.constant dense<0.000000e+00> : vector<8x128xf32>
    %182 = tpu.matmul %180, %1, %cst_55 {dimension_numbers = #tpu.dot_dimension_numbers<[1], [0], [0], [1], [0, 0, 1, 1], [], []>} : vector<8x32xf32>, vector<32x128xf32>, vector<8x128xf32> -> vector<8x128xf32>
    %183 = arith.addf %181, %182 : vector<8x128xf32>
    %184 = math.tanh %183 : vector<8x128xf32>
    %185 = vector.extract_strided_slice %184 {offsets = [0, 0], sizes = [8, 32], strides = [1, 1]} : vector<8x128xf32> to vector<8x32xf32>
    %cst_56 = arith.constant 5.000000e-01 : f32
    %186 = vector.broadcast %cst_56 : f32 to vector<8x32xf32>
    %187 = arith.mulf %186, %185 : vector<8x32xf32>
    %cst_57 = arith.constant 5.000000e-01 : f32
    %188 = vector.broadcast %cst_57 : f32 to vector<8x32xf32>
    %189 = arith.addf %187, %188 : vector<8x32xf32>
    %190 = vector.extract_strided_slice %184 {offsets = [0, 32], sizes = [8, 32], strides = [1, 1]} : vector<8x128xf32> to vector<8x32xf32>
    %cst_58 = arith.constant 5.000000e-01 : f32
    %191 = vector.broadcast %cst_58 : f32 to vector<8x32xf32>
    %192 = arith.mulf %191, %190 : vector<8x32xf32>
    %cst_59 = arith.constant 5.000000e-01 : f32
    %193 = vector.broadcast %cst_59 : f32 to vector<8x32xf32>
    %194 = arith.addf %192, %193 : vector<8x32xf32>
    %195 = vector.extract_strided_slice %184 {offsets = [0, 64], sizes = [8, 32], strides = [1, 1]} : vector<8x128xf32> to vector<8x32xf32>
    %196 = vector.extract_strided_slice %184 {offsets = [0, 96], sizes = [8, 32], strides = [1, 1]} : vector<8x128xf32> to vector<8x32xf32>
    %cst_60 = arith.constant 5.000000e-01 : f32
    %197 = vector.broadcast %cst_60 : f32 to vector<8x32xf32>
    %198 = arith.mulf %197, %196 : vector<8x32xf32>
    %cst_61 = arith.constant 5.000000e-01 : f32
    %199 = vector.broadcast %cst_61 : f32 to vector<8x32xf32>
    %200 = arith.addf %198, %199 : vector<8x32xf32>
    %201 = arith.mulf %194, %178 : vector<8x32xf32>
    %202 = arith.mulf %189, %195 : vector<8x32xf32>
    %203 = arith.addf %201, %202 : vector<8x32xf32>
    %204 = math.tanh %203 : vector<8x32xf32>
    %205 = arith.mulf %200, %204 : vector<8x32xf32>
    %c0_62 = arith.constant 0 : index
    %c0_63 = arith.constant 0 : index
    %206 = vector.load %arg3[%c0_62, %c0_63] : memref<96x16xf32, #tpu.memory_space<vmem>>, vector<56x16xf32>
    %c56 = arith.constant 56 : index
    %c0_64 = arith.constant 0 : index
    %207 = vector.load %arg3[%c56, %c0_64] : memref<96x16xf32, #tpu.memory_space<vmem>>, vector<32x16xf32>
    %c88 = arith.constant 88 : index
    %c0_65 = arith.constant 0 : index
    %208 = vector.load %arg3[%c88, %c0_65] : memref<96x16xf32, #tpu.memory_space<vmem>>, vector<8x16xf32>
    %c0_66 = arith.constant 0 : index
    %c0_67 = arith.constant 0 : index
    %209 = vector.load %arg4[%c0_66, %c0_67] : memref<24x32xf32, #tpu.memory_space<vmem>>, vector<16x32xf32>
    %c16 = arith.constant 16 : index
    %c0_68 = arith.constant 0 : index
    %210 = vector.load %arg4[%c16, %c0_68] : memref<24x32xf32, #tpu.memory_space<vmem>>, vector<8x32xf32>
    %c0_69 = arith.constant 0 : index
    %c0_70 = arith.constant 0 : index
    %211 = vector.load %arg5[%c0_69, %c0_70] : memref<40x8xf32, #tpu.memory_space<vmem>>, vector<32x8xf32>
    %c32 = arith.constant 32 : index
    %c0_71 = arith.constant 0 : index
    %212 = vector.load %arg5[%c32, %c0_71] : memref<40x8xf32, #tpu.memory_space<vmem>>, vector<8x8xf32>
    %c0_72 = arith.constant 0 : index
    %c0_73 = arith.constant 0 : index
    %213 = vector.load %arg1[%c0_72, %c0_73] : memref<8x56xf32, #tpu.memory_space<vmem>>, vector<8x56xf32>
    %cst_74 = arith.constant dense<0.000000e+00> : vector<8x16xf32>
    %214 = tpu.matmul %213, %206, %cst_74 {dimension_numbers = #tpu.dot_dimension_numbers<[1], [0], [0], [1], [0, 0, 1, 1], [], []>} : vector<8x56xf32>, vector<56x16xf32>, vector<8x16xf32> -> vector<8x16xf32>
    %cst_75 = arith.constant dense<0.000000e+00> : vector<8x16xf32>
    %215 = tpu.matmul %205, %207, %cst_75 {dimension_numbers = #tpu.dot_dimension_numbers<[1], [0], [0], [1], [0, 0, 1, 1], [], []>} : vector<8x32xf32>, vector<32x16xf32>, vector<8x16xf32> -> vector<8x16xf32>
    %216 = arith.addf %214, %215 : vector<8x16xf32>
    %217 = arith.addf %216, %208 : vector<8x16xf32>
    %cst_76 = arith.constant 0.000000e+00 : f32
    %218 = vector.broadcast %cst_76 : f32 to vector<8x16xf32>
    %219 = arith.maximumf %217, %218 : vector<8x16xf32>
    %cst_77 = arith.constant dense<0.000000e+00> : vector<8x32xf32>
    %220 = tpu.matmul %219, %209, %cst_77 {dimension_numbers = #tpu.dot_dimension_numbers<[1], [0], [0], [1], [0, 0, 1, 1], [], []>} : vector<8x16xf32>, vector<16x32xf32>, vector<8x32xf32> -> vector<8x32xf32>
    %221 = arith.addf %220, %210 : vector<8x32xf32>
    %cst_78 = arith.constant 0.000000e+00 : f32
    %222 = vector.broadcast %cst_78 : f32 to vector<8x32xf32>
    %223 = arith.maximumf %221, %222 : vector<8x32xf32>
    %cst_79 = arith.constant dense<0.000000e+00> : vector<8x8xf32>
    %224 = tpu.matmul %223, %211, %cst_79 {dimension_numbers = #tpu.dot_dimension_numbers<[1], [0], [0], [1], [0, 0, 1, 1], [], []>} : vector<8x32xf32>, vector<32x8xf32>, vector<8x8xf32> -> vector<8x8xf32>
    %225 = arith.addf %224, %212 : vector<8x8xf32>
    %226 = vector.extract_strided_slice %225 {offsets = [0, 0], sizes = [2, 8], strides = [1, 1]} : vector<8x8xf32> to vector<2x8xf32>
    %c0_80 = arith.constant 0 : index
    %c0_81 = arith.constant 0 : index
    %227 = vector.load %arg6[%c0_80, %c0_81] : memref<2x8xf32, #tpu.memory_space<vmem>>, vector<2x8xf32>
    tpu.vector_store %arg6[%c0_80, %c0_81], %226 {strides = array<i32>} : memref<2x8xf32, #tpu.memory_space<vmem>>, vector<2x8xf32>,
    return
  }
}

</mosaic_0001>

<llo_original>
// kernel: model_lstm_forward.1
$region0: #{model_lstm_forward.1}
  #allocation0 [shape = 'u32[]', space=smem, size = 0x4, offset = 0x4, fixed_abs, tag = 'smem constant byte address 0x4 - core index']
  #allocation1 [shape = 'u32[144,128]{1,0:T(1,128)}', space=vmem, size = 0x12000, scoped, tag = 'internal scratch']
  %s0 = inlined_call_operand.vmem [shape: f32[64,8], index: 0, kind: input, shape index: {}]
  %s1 = inlined_call_operand.vmem [shape: f32[8,56], index: 1, kind: input, shape index: {}]
  %s2 = inlined_call_operand.vmem [shape: f32[40,128], index: 2, kind: input, shape index: {}]
  %s3 = inlined_call_operand.vmem [shape: f32[96,16], index: 3, kind: input, shape index: {}]
  %s4 = inlined_call_operand.vmem [shape: f32[24,32], index: 4, kind: input, shape index: {}]
  %s5 = inlined_call_operand.vmem [shape: f32[40,8], index: 5, kind: input, shape index: {}]
  %s6 = inlined_call_operand.hbm [shape: f32[2,8], index: 6, kind: output, shape index: {}]
  %s7 = sld [smem:[#allocation0]]
  $region34: #{model_lstm_forward.1} parent=0
    _
  %s9 = ssub.s32 1, %s7
  %s10 = scalar_select 0, %s9, %s7
  $region1: #{model_lstm_forward.1} parent=0
    #allocation2 [shape = 'u8[1024]{0}', space=vmem, size = 0x400, scoped, tag = 'output window, operand 0, single buffered']
    #allocation3 [shape = 's32[1]{0}', space=sflag, size = 0x4, scoped, tag = 'scoped memory for model_lstm_forward.1']
    %11 = vsyncpa [#allocation3], 0
    // Predicated region
    $region2: #{model_lstm_forward.1} parent=1 // pred_check
      _
    $region3: #{model_lstm_forward.1} parent=1 // pred_check_branch
      %13 = sbr.rel (0) target = $region5
    $region4: #{model_lstm_forward.1} parent=1 // pred_region
      _
    $region5: #{model_lstm_forward.1} parent=1 // pred_fallthru
      _
    // Predicated region
    $region6: #{model_lstm_forward.1} parent=1 // pred_check
      _
    $region7: #{model_lstm_forward.1} parent=1 // pred_check_branch
      %15 = sbr.rel (0) target = $region9
    $region8: #{model_lstm_forward.1} parent=1 // pred_region
      _
    $region9: #{model_lstm_forward.1} parent=1 // pred_fallthru
      _
    // Predicated region
    $region10: #{model_lstm_forward.1} parent=1 // pred_check
      _
    $region11: #{model_lstm_forward.1} parent=1 // pred_check_branch
      %17 = sbr.rel (0) target = $region13
    $region12: #{model_lstm_forward.1} parent=1 // pred_region
      _
    $region13: #{model_lstm_forward.1} parent=1 // pred_fallthru
      _
    // Predicated region
    $region14: #{model_lstm_forward.1} parent=1 // pred_check
      _
    $region15: #{model_lstm_forward.1} parent=1 // pred_check_branch
      %19 = sbr.rel (0) target = $region17
    $region16: #{model_lstm_forward.1} parent=1 // pred_region
      _
    $region17: #{model_lstm_forward.1} parent=1 // pred_fallthru
      _
    // Predicated region
    $region18: #{model_lstm_forward.1} parent=1 // pred_check
      _
    $region19: #{model_lstm_forward.1} parent=1 // pred_check_branch
      %21 = sbr.rel (0) target = $region21
    $region20: #{model_lstm_forward.1} parent=1 // pred_region
      _
    $region21: #{model_lstm_forward.1} parent=1 // pred_fallthru
      _
    // Predicated region
    $region22: #{model_lstm_forward.1} parent=1 // pred_check
      _
    $region23: #{model_lstm_forward.1} parent=1 // pred_check_branch
      %23 = sbr.rel (0) target = $region25
    $region24: #{model_lstm_forward.1} parent=1 // pred_region
      _
    $region25: #{model_lstm_forward.1} parent=1 // pred_fallthru
      _
    %v24 = vld [vmem:[%s2] sm:$0xff]
    %v25 = vld [vmem:[%s2 + $0x8] sm:$0xff]
    %v26 = vld [vmem:[%s2 + $0x10] sm:$0xff]
    %v27 = vld [vmem:[%s2 + $0x18] sm:$0xff]
    %v28 = vld [vmem:[%s2 + $0x20] sm:$0xff]
    %v29 = vld [vmem:[%s0] sm:$0xff]
    %v30 = vld [vmem:[%s0 + $0x8] sm:$0xff]
    %v31 = vld [vmem:[%s0 + $0x10] sm:$0xff]
    %v32 = vld [vmem:[%s0 + $0x18] sm:$0xff]
    %v33 = vld [vmem:[%s0 + $0x20] sm:$0xff]
    %v34 = vld [vmem:[%s0 + $0x28] sm:$0xff]
    %v35 = vld [vmem:[%s0 + $0x30] sm:$0xff]
    %v36 = vld [vmem:[%s0 + $0x38] sm:$0xff]
    %vm37 = vcmask 64512
    %v39 = vsel %vm37, %v29, 0
    %v42 = vsel %vm37, %v30, 0
    %v45 = vsel %vm37, %v31, 0
    %v48 = vsel %vm37, %v32, 0
    %v51 = vsel %vm37, %v33, 0
    %v54 = vsel %vm37, %v34, 0
    %v57 = vsel %vm37, %v35, 0
    %v60 = vsel %vm37, %v36, 0
    %62 = vmatprep.subr.mxu0 0.0
    %63 = vmatpush1.msra.mxu0 %v24
    %64 = vmatprep.subr.mxu0 0.0
    %65 = vmatpush1.msra.mxu0 0.0
    %66 = vmatprep.subr.mxu0 0.0
    %67 = vmatpush1.msra.mxu0 0.0
    %68 = vmatprep.subr.mxu0 0.0
    %69 = vmatpush1.msra.mxu0 0.0
    %70 = vmatprep.subr.mxu0 0.0
    %71 = vmatpush1.msra.mxu0 0.0
    %72 = vmatprep.subr.mxu0 0.0
    %73 = vmatpush1.msra.mxu0 0.0
    %74 = vmatprep.subr.mxu0 0.0
    %75 = vmatpush1.msra.mxu0 0.0
    %76 = vmatprep.subr.mxu0 0.0
    %77 = vmatpush1.msra.mxu0 0.0
    %78 = vmatprep.subr.mxu0 0.0
    %79 = vmatpush1.msra.mxu0 0.0
    %80 = vmatprep.subr.mxu0 0.0
    %81 = vmatpush1.msra.mxu0 0.0
    %82 = vmatprep.subr.mxu0 0.0
    %83 = vmatpush1.msra.mxu0 0.0
    %84 = vmatprep.subr.mxu0 0.0
    %85 = vmatpush1.msra.mxu0 0.0
    %86 = vmatprep.subr.mxu0 0.0
    %87 = vmatpush1.msra.mxu0 0.0
    %88 = vmatprep.subr.mxu0 0.0
    %89 = vmatpush1.msra.mxu0 0.0
    %90 = vmatprep.subr.mxu0 0.0
    %91 = vmatpush1.msra.mxu0 0.0
    %92 = vmatprep.subr.mxu0 0.0
    %93 = vmatpush1.msra.mxu0 0.0
    %94 = vmatprep.subr.mxu0 0.0
    %95 = vmatpush1.msra.mxu0 0.0
    %96 = vmatprep.subr.mxu0 0.0
    %97 = vmatpush1.msra.mxu0 0.0
    %98 = vmatprep.subr.mxu0 0.0
    %99 = vmatpush1.msra.mxu0 0.0
    %100 = vmatprep.subr.mxu0 0.0
    %101 = vmatpush1.msra.mxu0 0.0
    %102 = vmatprep.subr.mxu0 0.0
    %103 = vmatpush1.msra.mxu0 0.0
    %104 = vmatprep.subr.mxu0 0.0
    %105 = vmatpush1.msra.mxu0 0.0
    %106 = vmatprep.subr.mxu0 0.0
    %107 = vmatpush1.msra.mxu0 0.0
    %108 = vmatprep.subr.mxu0 0.0
    %109 = vmatpush1.msra.mxu0 0.0
    %110 = vmatprep.subr.mxu0 0.0
    %111 = vmatpush1.msra.mxu0 0.0
    %112 = vmatprep.subr.mxu0 0.0
    %113 = vmatpush1.msra.mxu0 0.0
    %114 = vmatprep.subr.mxu0 0.0
    %115 = vmatpush1.msra.mxu0 0.0
    %116 = vmatprep.subr.mxu0 0.0
    %117 = vmatpush1.msra.mxu0 0.0
    %118 = vmatprep.subr.mxu0 0.0
    %119 = vmatpush1.msra.mxu0 0.0
    %120 = vmatprep.subr.mxu0 0.0
    %121 = vmatpush1.msra.mxu0 0.0
    %122 = vmatprep.subr.mxu0 0.0
    %123 = vmatpush1.msra.mxu0 0.0
    %124 = vmatprep.subr.mxu0 0.0
    %125 = vmatpush1.msra.mxu0 0.0
    %126 = vmatprep.mubr.f32.mxu0 0.0
    %127 = vmatmul.mubr.f32.gmra.mrb[0].mxu0 %v39
    %v128 = vpop.f32.mrb[0].mxu0
    %v129 = vadd.f32 0.0, %v128
    %v130 = vpop.f32.mrb[0].mxu0
    %131 = vmatprep.mubr.f32.mxu0 0.0
    %132 = vmatmul.mubr.f32.gmra.mrb[0].mxu0 %v42
    %v133 = vpop.f32.mrb[0].mxu0
    %v134 = vadd.f32 0.0, %v133
    %v135 = vpop.f32.mrb[0].mxu0
    %136 = vmatprep.mubr.f32.mxu0 0.0
    %137 = vmatmul.mubr.f32.gmra.mrb[0].mxu0 %v45
    %v138 = vpop.f32.mrb[0].mxu0
    %v139 = vadd.f32 0.0, %v138
    %v140 = vpop.f32.mrb[0].mxu0
    %141 = vmatprep.mubr.f32.mxu0 0.0
    %142 = vmatmul.mubr.f32.gmra.mrb[0].mxu0 %v48
    %v143 = vpop.f32.mrb[0].mxu0
    %v144 = vadd.f32 0.0, %v143
    %v145 = vpop.f32.mrb[0].mxu0
    %146 = vmatprep.mubr.f32.mxu0 0.0
    %147 = vmatmul.mubr.f32.gmra.mrb[0].mxu0 %v51
    %v148 = vpop.f32.mrb[0].mxu0
    %v149 = vadd.f32 0.0, %v148
    %v150 = vpop.f32.mrb[0].mxu0
    %151 = vmatprep.mubr.f32.mxu0 0.0
    %152 = vmatmul.mubr.f32.gmra.mrb[0].mxu0 %v54
    %v153 = vpop.f32.mrb[0].mxu0
    %v154 = vadd.f32 0.0, %v153
    %v155 = vpop.f32.mrb[0].mxu0
    %156 = vmatprep.mubr.f32.mxu0 0.0
    %157 = vmatmul.mubr.f32.gmra.mrb[0].mxu0 %v57
    %v158 = vpop.f32.mrb[0].mxu0
    %v159 = vadd.f32 0.0, %v158
    %v160 = vpop.f32.mrb[0].mxu0
    %161 = vmatprep.mubr.f32.mxu0 0.0
    %162 = vmatmul.mubr.f32.gmra.mrb[0].mxu0 %v60
    %v163 = vpop.f32.mrb[0].mxu0
    %v164 = vadd.f32 0.0, %v163
    %v165 = vpop.f32.mrb[0].mxu0
    %166 = vdwg.mxu0
    %vm167 = vcmask 261120
    %v169 = vsel %vm167, 0.0, 0
    %171 = vmatprep.subr.mxu0 0.0
    %172 = vmatpush1.msra.mxu0 %v25
    %173 = vmatprep.subr.mxu0 0.0
    %174 = vmatpush1.msra.mxu0 %v26
    %175 = vmatprep.subr.mxu0 0.0
    %176 = vmatpush1.msra.mxu0 %v27
    %177 = vmatprep.subr.mxu0 0.0
    %178 = vmatpush1.msra.mxu0 %v28
    %179 = vmatprep.subr.mxu0 0.0
    %180 = vmatpush1.msra.mxu0 0.0
    %181 = vmatprep.subr.mxu0 0.0
    %182 = vmatpush1.msra.mxu0 0.0
    %183 = vmatprep.subr.mxu0 0.0
    %184 = vmatpush1.msra.mxu0 0.0
    %185 = vmatprep.subr.mxu0 0.0
    %186 = vmatpush1.msra.mxu0 0.0
    %187 = vmatprep.subr.mxu0 0.0
    %188 = vmatpush1.msra.mxu0 0.0
    %189 = vmatprep.subr.mxu0 0.0
    %190 = vmatpush1.msra.mxu0 0.0
    %191 = vmatprep.subr.mxu0 0.0
    %192 = vmatpush1.msra.mxu0 0.0
    %193 = vmatprep.subr.mxu0 0.0
    %194 = vmatpush1.msra.mxu0 0.0
    %195 = vmatprep.subr.mxu0 0.0
    %196 = vmatpush1.msra.mxu0 0.0
    %197 = vmatprep.subr.mxu0 0.0
    %198 = vmatpush1.msra.mxu0 0.0
    %199 = vmatprep.subr.mxu0 0.0
    %200 = vmatpush1.msra.mxu0 0.0
    %201 = vmatprep.subr.mxu0 0.0
    %202 = vmatpush1.msra.mxu0 0.0
    %203 = vmatprep.subr.mxu0 0.0
    %204 = vmatpush1.msra.mxu0 0.0
    %205 = vmatprep.subr.mxu0 0.0
    %206 = vmatpush1.msra.mxu0 0.0
    %207 = vmatprep.subr.mxu0 0.0
    %208 = vmatpush1.msra.mxu0 0.0
    %209 = vmatprep.subr.mxu0 0.0
    %210 = vmatpush1.msra.mxu0 0.0
    %211 = vmatprep.subr.mxu0 0.0
    %212 = vmatpush1.msra.mxu0 0.0
    %213 = vmatprep.subr.mxu0 0.0
    %214 = vmatpush1.msra.mxu0 0.0
    %215 = vmatprep.subr.mxu0 0.0
    %216 = vmatpush1.msra.mxu0 0.0
    %217 = vmatprep.subr.mxu0 0.0
    %218 = vmatpush1.msra.mxu0 0.0
    %219 = vmatprep.subr.mxu0 0.0
    %220 = vmatpush1.msra.mxu0 0.0
    %221 = vmatprep.subr.mxu0 0.0
    %222 = vmatpush1.msra.mxu0 0.0
    %223 = vmatprep.subr.mxu0 0.0
    %224 = vmatpush1.msra.mxu0 0.0
    %225 = vmatprep.subr.mxu0 0.0
    %226 = vmatpush1.msra.mxu0 0.0
    %227 = vmatprep.subr.mxu0 0.0
    %228 = vmatpush1.msra.mxu0 0.0
    %229 = vmatprep.subr.mxu0 0.0
    %230 = vmatpush1.msra.mxu0 0.0
    %231 = vmatprep.subr.mxu0 0.0
    %232 = vmatpush1.msra.mxu0 0.0
    %233 = vmatprep.subr.mxu0 0.0
    %234 = vmatpush1.msra.mxu0 0.0
    %235 = vmatprep.mubr.f32.mxu0 0.0
    %236 = vmatmul.mubr.f32.gmra.mrb[0].mxu0 %v169
    %v237 = vpop.f32.mrb[0].mxu0
    %v238 = vadd.f32 0.0, %v237
    %v239 = vpop.f32.mrb[0].mxu0
    %240 = vdwg.mxu0
    %v241 = vadd.f32 %v129, %v238
    %v242 = vtanh.pop %v241
    %v243 = vmul.f32 %v242, 0.5
    %v244 = vadd.f32 %v243, 0.5
    %v245 = vmul.f32 %v244, 0.0
    %247 = vrot.lane.b32.xlu0 %v242, 64
    %v248 = vpop.permute.xlu0 %247
    %v250 = vmul.f32 %v244, %v248
    %252 = vrot.lane.b32.xlu0 %v250, 32
    %v253 = vpop.permute.xlu0 %252
    %v255 = vadd.f32 %v245, %v253
    %v256 = vtanh.pop %v255
    %258 = vrot.lane.b32.xlu0 %v256, 64
    %v259 = vpop.permute.xlu0 %258
    %v261 = vmul.f32 %v244, %v259
    %263 = vrot.lane.b32.xlu0 %v261, 32
    %v264 = vpop.permute.xlu0 %263
    %v265 = vsel %vm167, %v264, 0
    %267 = vmatprep.subr.mxu0 0.0
    %268 = vmatpush1.msra.mxu0 %v25
    %269 = vmatprep.subr.mxu0 0.0
    %270 = vmatpush1.msra.mxu0 %v26
    %271 = vmatprep.subr.mxu0 0.0
    %272 = vmatpush1.msra.mxu0 %v27
    %273 = vmatprep.subr.mxu0 0.0
    %274 = vmatpush1.msra.mxu0 %v28
    %275 = vmatprep.subr.mxu0 0.0
    %276 = vmatpush1.msra.mxu0 0.0
    %277 = vmatprep.subr.mxu0 0.0
    %278 = vmatpush1.msra.mxu0 0.0
    %279 = vmatprep.subr.mxu0 0.0
    %280 = vmatpush1.msra.mxu0 0.0
    %281 = vmatprep.subr.mxu0 0.0
    %282 = vmatpush1.msra.mxu0 0.0
    %283 = vmatprep.subr.mxu0 0.0
    %284 = vmatpush1.msra.mxu0 0.0
    %285 = vmatprep.subr.mxu0 0.0
    %286 = vmatpush1.msra.mxu0 0.0
    %287 = vmatprep.subr.mxu0 0.0
    %288 = vmatpush1.msra.mxu0 0.0
    %289 = vmatprep.subr.mxu0 0.0
    %290 = vmatpush1.msra.mxu0 0.0
    %291 = vmatprep.subr.mxu0 0.0
    %292 = vmatpush1.msra.mxu0 0.0
    %293 = vmatprep.subr.mxu0 0.0
    %294 = vmatpush1.msra.mxu0 0.0
    %295 = vmatprep.subr.mxu0 0.0
    %296 = vmatpush1.msra.mxu0 0.0
    %297 = vmatprep.subr.mxu0 0.0
    %298 = vmatpush1.msra.mxu0 0.0
    %299 = vmatprep.subr.mxu0 0.0
    %300 = vmatpush1.msra.mxu0 0.0
    %301 = vmatprep.subr.mxu0 0.0
    %302 = vmatpush1.msra.mxu0 0.0
    %303 = vmatprep.subr.mxu0 0.0
    %304 = vmatpush1.msra.mxu0 0.0
    %305 = vmatprep.subr.mxu0 0.0
    %306 = vmatpush1.msra.mxu0 0.0
    %307 = vmatprep.subr.mxu0 0.0
    %308 = vmatpush1.msra.mxu0 0.0
    %309 = vmatprep.subr.mxu0 0.0
    %310 = vmatpush1.msra.mxu0 0.0
    %311 = vmatprep.subr.mxu0 0.0
    %312 = vmatpush1.msra.mxu0 0.0
    %313 = vmatprep.subr.mxu0 0.0
    %314 = vmatpush1.msra.mxu0 0.0
    %315 = vmatprep.subr.mxu0 0.0
    %316 = vmatpush1.msra.mxu0 0.0
    %317 = vmatprep.subr.mxu0 0.0
    %318 = vmatpush1.msra.mxu0 0.0
    %319 = vmatprep.subr.mxu0 0.0
    %320 = vmatpush1.msra.mxu0 0.0
    %321 = vmatprep.subr.mxu0 0.0
    %322 = vmatpush1.msra.mxu0 0.0
    %323 = vmatprep.subr.mxu0 0.0
    %324 = vmatpush1.msra.mxu0 0.0
    %325 = vmatprep.subr.mxu0 0.0
    %326 = vmatpush1.msra.mxu0 0.0
    %327 = vmatprep.subr.mxu0 0.0
    %328 = vmatpush1.msra.mxu0 0.0
    %329 = vmatprep.subr.mxu0 0.0
    %330 = vmatpush1.msra.mxu0 0.0
    %331 = vmatprep.mubr.f32.mxu0 0.0
    %332 = vmatmul.mubr.f32.gmra.mrb[0].mxu0 %v265
    %v333 = vpop.f32.mrb[0].mxu0
    %v334 = vadd.f32 0.0, %v333
    %v335 = vpop.f32.mrb[0].mxu0
    %336 = vdwg.mxu0
    %v337 = vadd.f32 %v134, %v334
    %v338 = vtanh.pop %v337
    %v339 = vmul.f32 %v338, 0.5
    %v340 = vadd.f32 %v339, 0.5
    %v341 = vmul.f32 %v340, %v255
    %343 = vrot.lane.b32.xlu0 %v338, 64
    %v344 = vpop.permute.xlu0 %343
    %v346 = vmul.f32 %v340, %v344
    %348 = vrot.lane.b32.xlu0 %v346, 32
    %v349 = vpop.permute.xlu0 %348
    %v351 = vadd.f32 %v341, %v349
    %v352 = vtanh.pop %v351
    %354 = vrot.lane.b32.xlu0 %v352, 64
    %v355 = vpop.permute.xlu0 %354
    %v357 = vmul.f32 %v340, %v355
    %359 = vrot.lane.b32.xlu0 %v357, 32
    %v360 = vpop.permute.xlu0 %359
    %v361 = vsel %vm167, %v360, 0
    %363 = vmatprep.subr.mxu0 0.0
    %364 = vmatpush1.msra.mxu0 %v25
    %365 = vmatprep.subr.mxu0 0.0
    %366 = vmatpush1.msra.mxu0 %v26
    %367 = vmatprep.subr.mxu0 0.0
    %368 = vmatpush1.msra.mxu0 %v27
    %369 = vmatprep.subr.mxu0 0.0
    %370 = vmatpush1.msra.mxu0 %v28
    %371 = vmatprep.subr.mxu0 0.0
    %372 = vmatpush1.msra.mxu0 0.0
    %373 = vmatprep.subr.mxu0 0.0
    %374 = vmatpush1.msra.mxu0 0.0
    %375 = vmatprep.subr.mxu0 0.0
    %376 = vmatpush1.msra.mxu0 0.0
    %377 = vmatprep.subr.mxu0 0.0
    %378 = vmatpush1.msra.mxu0 0.0
    %379 = vmatprep.subr.mxu0 0.0
    %380 = vmatpush1.msra.mxu0 0.0
    %381 = vmatprep.subr.mxu0 0.0
    %382 = vmatpush1.msra.mxu0 0.0
    %383 = vmatprep.subr.mxu0 0.0
    %384 = vmatpush1.msra.mxu0 0.0
    %385 = vmatprep.subr.mxu0 0.0
    %386 = vmatpush1.msra.mxu0 0.0
    %387 = vmatprep.subr.mxu0 0.0
    %388 = vmatpush1.msra.mxu0 0.0
    %389 = vmatprep.subr.mxu0 0.0
    %390 = vmatpush1.msra.mxu0 0.0
    %391 = vmatprep.subr.mxu0 0.0
    %392 = vmatpush1.msra.mxu0 0.0
    %393 = vmatprep.subr.mxu0 0.0
    %394 = vmatpush1.msra.mxu0 0.0
    %395 = vmatprep.subr.mxu0 0.0
    %396 = vmatpush1.msra.mxu0 0.0
    %397 = vmatprep.subr.mxu0 0.0
    %398 = vmatpush1.msra.mxu0 0.0
    %399 = vmatprep.subr.mxu0 0.0
    %400 = vmatpush1.msra.mxu0 0.0
    %401 = vmatprep.subr.mxu0 0.0
    %402 = vmatpush1.msra.mxu0 0.0
    %403 = vmatprep.subr.mxu0 0.0
    %404 = vmatpush1.msra.mxu0 0.0
    %405 = vmatprep.subr.mxu0 0.0
    %406 = vmatpush1.msra.mxu0 0.0
    %407 = vmatprep.subr.mxu0 0.0
    %408 = vmatpush1.msra.mxu0 0.0
    %409 = vmatprep.subr.mxu0 0.0
    %410 = vmatpush1.msra.mxu0 0.0
    %411 = vmatprep.subr.mxu0 0.0
    %412 = vmatpush1.msra.mxu0 0.0
    %413 = vmatprep.subr.mxu0 0.0
    %414 = vmatpush1.msra.mxu0 0.0
    %415 = vmatprep.subr.mxu0 0.0
    %416 = vmatpush1.msra.mxu0 0.0
    %417 = vmatprep.subr.mxu0 0.0
    %418 = vmatpush1.msra.mxu0 0.0
    %419 = vmatprep.subr.mxu0 0.0
    %420 = vmatpush1.msra.mxu0 0.0
    %421 = vmatprep.subr.mxu0 0.0
    %422 = vmatpush1.msra.mxu0 0.0
    %423 = vmatprep.subr.mxu0 0.0
    %424 = vmatpush1.msra.mxu0 0.0
    %425 = vmatprep.subr.mxu0 0.0
    %426 = vmatpush1.msra.mxu0 0.0
    %427 = vmatprep.mubr.f32.mxu0 0.0
    %428 = vmatmul.mubr.f32.gmra.mrb[0].mxu0 %v361
    %v429 = vpop.f32.mrb[0].mxu0
    %v430 = vadd.f32 0.0, %v429
    %v431 = vpop.f32.mrb[0].mxu0
    %432 = vdwg.mxu0
    %v433 = vadd.f32 %v139, %v430
    %v434 = vtanh.pop %v433
    %v435 = vmul.f32 %v434, 0.5
    %v436 = vadd.f32 %v435, 0.5
    %v437 = vmul.f32 %v436, %v351
    %439 = vrot.lane.b32.xlu0 %v434, 64
    %v440 = vpop.permute.xlu0 %439
    %v442 = vmul.f32 %v436, %v440
    %444 = vrot.lane.b32.xlu0 %v442, 32
    %v445 = vpop.permute.xlu0 %444
    %v447 = vadd.f32 %v437, %v445
    %v448 = vtanh.pop %v447
    %450 = vrot.lane.b32.xlu0 %v448, 64
    %v451 = vpop.permute.xlu0 %450
    %v453 = vmul.f32 %v436, %v451
    %455 = vrot.lane.b32.xlu0 %v453, 32
    %v456 = vpop.permute.xlu0 %455
    %v457 = vsel %vm167, %v456, 0
    %459 = vmatprep.subr.mxu0 0.0
    %460 = vmatpush1.msra.mxu0 %v25
    %461 = vmatprep.subr.mxu0 0.0
    %462 = vmatpush1.msra.mxu0 %v26
    %463 = vmatprep.subr.mxu0 0.0
    %464 = vmatpush1.msra.mxu0 %v27
    %465 = vmatprep.subr.mxu0 0.0
    %466 = vmatpush1.msra.mxu0 %v28
    %467 = vmatprep.subr.mxu0 0.0
    %468 = vmatpush1.msra.mxu0 0.0
    %469 = vmatprep.subr.mxu0 0.0
    %470 = vmatpush1.msra.mxu0 0.0
    %471 = vmatprep.subr.mxu0 0.0
    %472 = vmatpush1.msra.mxu0 0.0
    %473 = vmatprep.subr.mxu0 0.0
    %474 = vmatpush1.msra.mxu0 0.0
    %475 = vmatprep.subr.mxu0 0.0
    %476 = vmatpush1.msra.mxu0 0.0
    %477 = vmatprep.subr.mxu0 0.0
    %478 = vmatpush1.msra.mxu0 0.0
    %479 = vmatprep.subr.mxu0 0.0
    %480 = vmatpush1.msra.mxu0 0.0
    %481 = vmatprep.subr.mxu0 0.0
    %482 = vmatpush1.msra.mxu0 0.0
    %483 = vmatprep.subr.mxu0 0.0
    %484 = vmatpush1.msra.mxu0 0.0
    %485 = vmatprep.subr.mxu0 0.0
    %486 = vmatpush1.msra.mxu0 0.0
    %487 = vmatprep.subr.mxu0 0.0
    %488 = vmatpush1.msra.mxu0 0.0
    %489 = vmatprep.subr.mxu0 0.0
    %490 = vmatpush1.msra.mxu0 0.0
    %491 = vmatprep.subr.mxu0 0.0
    %492 = vmatpush1.msra.mxu0 0.0
    %493 = vmatprep.subr.mxu0 0.0
    %494 = vmatpush1.msra.mxu0 0.0
    %495 = vmatprep.subr.mxu0 0.0
    %496 = vmatpush1.msra.mxu0 0.0
    %497 = vmatprep.subr.mxu0 0.0
    %498 = vmatpush1.msra.mxu0 0.0
    %499 = vmatprep.subr.mxu0 0.0
    %500 = vmatpush1.msra.mxu0 0.0
    %501 = vmatprep.subr.mxu0 0.0
    %502 = vmatpush1.msra.mxu0 0.0
    %503 = vmatprep.subr.mxu0 0.0
    %504 = vmatpush1.msra.mxu0 0.0
    %505 = vmatprep.subr.mxu0 0.0
    %506 = vmatpush1.msra.mxu0 0.0
    %507 = vmatprep.subr.mxu0 0.0
    %508 = vmatpush1.msra.mxu0 0.0
    %509 = vmatprep.subr.mxu0 0.0
    %510 = vmatpush1.msra.mxu0 0.0
    %511 = vmatprep.subr.mxu0 0.0
    %512 = vmatpush1.msra.mxu0 0.0
    %513 = vmatprep.subr.mxu0 0.0
    %514 = vmatpush1.msra.mxu0 0.0
    %515 = vmatprep.subr.mxu0 0.0
    %516 = vmatpush1.msra.mxu0 0.0
    %517 = vmatprep.subr.mxu0 0.0
    %518 = vmatpush1.msra.mxu0 0.0
    %519 = vmatprep.subr.mxu0 0.0
    %520 = vmatpush1.msra.mxu0 0.0
    %521 = vmatprep.subr.mxu0 0.0
    %522 = vmatpush1.msra.mxu0 0.0
    %523 = vmatprep.mubr.f32.mxu0 0.0
    %524 = vmatmul.mubr.f32.gmra.mrb[0].mxu0 %v457
    %v525 = vpop.f32.mrb[0].mxu0
    %v526 = vadd.f32 0.0, %v525
    %v527 = vpop.f32.mrb[0].mxu0
    %528 = vdwg.mxu0
    %v529 = vadd.f32 %v144, %v526
    %v530 = vtanh.pop %v529
    %v531 = vmul.f32 %v530, 0.5
    %v532 = vadd.f32 %v531, 0.5
    %v533 = vmul.f32 %v532, %v447
    %535 = vrot.lane.b32.xlu0 %v530, 64
    %v536 = vpop.permute.xlu0 %535
    %v538 = vmul.f32 %v532, %v536
    %540 = vrot.lane.b32.xlu0 %v538, 32
    %v541 = vpop.permute.xlu0 %540
    %v543 = vadd.f32 %v533, %v541
    %v544 = vtanh.pop %v543
    %546 = vrot.lane.b32.xlu0 %v544, 64
    %v547 = vpop.permute.xlu0 %546
    %v549 = vmul.f32 %v532, %v547
    %551 = vrot.lane.b32.xlu0 %v549, 32
    %v552 = vpop.permute.xlu0 %551
    %v553 = vsel %vm167, %v552, 0
    %555 = vmatprep.subr.mxu0 0.0
    %556 = vmatpush1.msra.mxu0 %v25
    %557 = vmatprep.subr.mxu0 0.0
    %558 = vmatpush1.msra.mxu0 %v26
    %559 = vmatprep.subr.mxu0 0.0
    %560 = vmatpush1.msra.mxu0 %v27
    %561 = vmatprep.subr.mxu0 0.0
    %562 = vmatpush1.msra.mxu0 %v28
    %563 = vmatprep.subr.mxu0 0.0
    %564 = vmatpush1.msra.mxu0 0.0
    %565 = vmatprep.subr.mxu0 0.0
    %566 = vmatpush1.msra.mxu0 0.0
    %567 = vmatprep.subr.mxu0 0.0
    %568 = vmatpush1.msra.mxu0 0.0
    %569 = vmatprep.subr.mxu0 0.0
    %570 = vmatpush1.msra.mxu0 0.0
    %571 = vmatprep.subr.mxu0 0.0
    %572 = vmatpush1.msra.mxu0 0.0
    %573 = vmatprep.subr.mxu0 0.0
    %574 = vmatpush1.msra.mxu0 0.0
    %575 = vmatprep.subr.mxu0 0.0
    %576 = vmatpush1.msra.mxu0 0.0
    %577 = vmatprep.subr.mxu0 0.0
    %578 = vmatpush1.msra.mxu0 0.0
    %579 = vmatprep.subr.mxu0 0.0
    %580 = vmatpush1.msra.mxu0 0.0
    %581 = vmatprep.subr.mxu0 0.0
    %582 = vmatpush1.msra.mxu0 0.0
    %583 = vmatprep.subr.mxu0 0.0
    %584 = vmatpush1.msra.mxu0 0.0
    %585 = vmatprep.subr.mxu0 0.0
    %586 = vmatpush1.msra.mxu0 0.0
    %587 = vmatprep.subr.mxu0 0.0
    %588 = vmatpush1.msra.mxu0 0.0
    %589 = vmatprep.subr.mxu0 0.0
    %590 = vmatpush1.msra.mxu0 0.0
    %591 = vmatprep.subr.mxu0 0.0
    %592 = vmatpush1.msra.mxu0 0.0
    %593 = vmatprep.subr.mxu0 0.0
    %594 = vmatpush1.msra.mxu0 0.0
    %595 = vmatprep.subr.mxu0 0.0
    %596 = vmatpush1.msra.mxu0 0.0
    %597 = vmatprep.subr.mxu0 0.0
    %598 = vmatpush1.msra.mxu0 0.0
    %599 = vmatprep.subr.mxu0 0.0
    %600 = vmatpush1.msra.mxu0 0.0
    %601 = vmatprep.subr.mxu0 0.0
    %602 = vmatpush1.msra.mxu0 0.0
    %603 = vmatprep.subr.mxu0 0.0
    %604 = vmatpush1.msra.mxu0 0.0
    %605 = vmatprep.subr.mxu0 0.0
    %606 = vmatpush1.msra.mxu0 0.0
    %607 = vmatprep.subr.mxu0 0.0
    %608 = vmatpush1.msra.mxu0 0.0
    %609 = vmatprep.subr.mxu0 0.0
    %610 = vmatpush1.msra.mxu0 0.0
    %611 = vmatprep.subr.mxu0 0.0
    %612 = vmatpush1.msra.mxu0 0.0
    %613 = vmatprep.subr.mxu0 0.0
    %614 = vmatpush1.msra.mxu0 0.0
    %615 = vmatprep.subr.mxu0 0.0
    %616 = vmatpush1.msra.mxu0 0.0
    %617 = vmatprep.subr.mxu0 0.0
    %618 = vmatpush1.msra.mxu0 0.0
    %619 = vmatprep.mubr.f32.mxu0 0.0
    %620 = vmatmul.mubr.f32.gmra.mrb[0].mxu0 %v553
    %v621 = vpop.f32.mrb[0].mxu0
    %v622 = vadd.f32 0.0, %v621
    %v623 = vpop.f32.mrb[0].mxu0
    %624 = vdwg.mxu0
    %v625 = vadd.f32 %v149, %v622
    %v626 = vtanh.pop %v625
    %v627 = vmul.f32 %v626, 0.5
    %v628 = vadd.f32 %v627, 0.5
    %v629 = vmul.f32 %v628, %v543
    %631 = vrot.lane.b32.xlu0 %v626, 64
    %v632 = vpop.permute.xlu0 %631
    %v634 = vmul.f32 %v628, %v632
    %636 = vrot.lane.b32.xlu0 %v634, 32
    %v637 = vpop.permute.xlu0 %636
    %v639 = vadd.f32 %v629, %v637
    %v640 = vtanh.pop %v639
    %642 = vrot.lane.b32.xlu0 %v640, 64
    %v643 = vpop.permute.xlu0 %642
    %v645 = vmul.f32 %v628, %v643
    %647 = vrot.lane.b32.xlu0 %v645, 32
    %v648 = vpop.permute.xlu0 %647
    %v649 = vsel %vm167, %v648, 0
    %651 = vmatprep.subr.mxu0 0.0
    %652 = vmatpush1.msra.mxu0 %v25
    %653 = vmatprep.subr.mxu0 0.0
    %654 = vmatpush1.msra.mxu0 %v26
    %655 = vmatprep.subr.mxu0 0.0
    %656 = vmatpush1.msra.mxu0 %v27
    %657 = vmatprep.subr.mxu0 0.0
    %658 = vmatpush1.msra.mxu0 %v28
    %659 = vmatprep.subr.mxu0 0.0
    %660 = vmatpush1.msra.mxu0 0.0
    %661 = vmatprep.subr.mxu0 0.0
    %662 = vmatpush1.msra.mxu0 0.0
    %663 = vmatprep.subr.mxu0 0.0
    %664 = vmatpush1.msra.mxu0 0.0
    %665 = vmatprep.subr.mxu0 0.0
    %666 = vmatpush1.msra.mxu0 0.0
    %667 = vmatprep.subr.mxu0 0.0
    %668 = vmatpush1.msra.mxu0 0.0
    %669 = vmatprep.subr.mxu0 0.0
    %670 = vmatpush1.msra.mxu0 0.0
    %671 = vmatprep.subr.mxu0 0.0
    %672 = vmatpush1.msra.mxu0 0.0
    %673 = vmatprep.subr.mxu0 0.0
    %674 = vmatpush1.msra.mxu0 0.0
    %675 = vmatprep.subr.mxu0 0.0
    %676 = vmatpush1.msra.mxu0 0.0
    %677 = vmatprep.subr.mxu0 0.0
    %678 = vmatpush1.msra.mxu0 0.0
    %679 = vmatprep.subr.mxu0 0.0
    %680 = vmatpush1.msra.mxu0 0.0
    %681 = vmatprep.subr.mxu0 0.0
    %682 = vmatpush1.msra.mxu0 0.0
    %683 = vmatprep.subr.mxu0 0.0
    %684 = vmatpush1.msra.mxu0 0.0
    %685 = vmatprep.subr.mxu0 0.0
    %686 = vmatpush1.msra.mxu0 0.0
    %687 = vmatprep.subr.mxu0 0.0
    %688 = vmatpush1.msra.mxu0 0.0
    %689 = vmatprep.subr.mxu0 0.0
    %690 = vmatpush1.msra.mxu0 0.0
    %691 = vmatprep.subr.mxu0 0.0
    %692 = vmatpush1.msra.mxu0 0.0
    %693 = vmatprep.subr.mxu0 0.0
    %694 = vmatpush1.msra.mxu0 0.0
    %695 = vmatprep.subr.mxu0 0.0
    %696 = vmatpush1.msra.mxu0 0.0
    %697 = vmatprep.subr.mxu0 0.0
    %698 = vmatpush1.msra.mxu0 0.0
    %699 = vmatprep.subr.mxu0 0.0
    %700 = vmatpush1.msra.mxu0 0.0
    %701 = vmatprep.subr.mxu0 0.0
    %702 = vmatpush1.msra.mxu0 0.0
    %703 = vmatprep.subr.mxu0 0.0
    %704 = vmatpush1.msra.mxu0 0.0
    %705 = vmatprep.subr.mxu0 0.0
    %706 = vmatpush1.msra.mxu0 0.0
    %707 = vmatprep.subr.mxu0 0.0
    %708 = vmatpush1.msra.mxu0 0.0
    %709 = vmatprep.subr.mxu0 0.0
    %710 = vmatpush1.msra.mxu0 0.0
    %711 = vmatprep.subr.mxu0 0.0
    %712 = vmatpush1.msra.mxu0 0.0
    %713 = vmatprep.subr.mxu0 0.0
    %714 = vmatpush1.msra.mxu0 0.0
    %715 = vmatprep.mubr.f32.mxu0 0.0
    %716 = vmatmul.mubr.f32.gmra.mrb[0].mxu0 %v649
    %v717 = vpop.f32.mrb[0].mxu0
    %v718 = vadd.f32 0.0, %v717
    %v719 = vpop.f32.mrb[0].mxu0
    %720 = vdwg.mxu0
    %v721 = vadd.f32 %v154, %v718
    %v722 = vtanh.pop %v721
    %v723 = vmul.f32 %v722, 0.5
    %v724 = vadd.f32 %v723, 0.5
    %v725 = vmul.f32 %v724, %v639
    %727 = vrot.lane.b32.xlu0 %v722, 64
    %v728 = vpop.permute.xlu0 %727
    %v730 = vmul.f32 %v724, %v728
    %732 = vrot.lane.b32.xlu0 %v730, 32
    %v733 = vpop.permute.xlu0 %732
    %v735 = vadd.f32 %v725, %v733
    %v736 = vtanh.pop %v735
    %738 = vrot.lane.b32.xlu0 %v736, 64
    %v739 = vpop.permute.xlu0 %738
    %v741 = vmul.f32 %v724, %v739
    %743 = vrot.lane.b32.xlu0 %v741, 32
    %v744 = vpop.permute.xlu0 %743
    %v745 = vsel %vm167, %v744, 0
    %747 = vmatprep.subr.mxu0 0.0
    %748 = vmatpush1.msra.mxu0 %v25
    %749 = vmatprep.subr.mxu0 0.0
    %750 = vmatpush1.msra.mxu0 %v26
    %751 = vmatprep.subr.mxu0 0.0
    %752 = vmatpush1.msra.mxu0 %v27
    %753 = vmatprep.subr.mxu0 0.0
    %754 = vmatpush1.msra.mxu0 %v28
    %755 = vmatprep.subr.mxu0 0.0
    %756 = vmatpush1.msra.mxu0 0.0
    %757 = vmatprep.subr.mxu0 0.0
    %758 = vmatpush1.msra.mxu0 0.0
    %759 = vmatprep.subr.mxu0 0.0
    %760 = vmatpush1.msra.mxu0 0.0
    %761 = vmatprep.subr.mxu0 0.0
    %762 = vmatpush1.msra.mxu0 0.0
    %763 = vmatprep.subr.mxu0 0.0
    %764 = vmatpush1.msra.mxu0 0.0
    %765 = vmatprep.subr.mxu0 0.0
    %766 = vmatpush1.msra.mxu0 0.0
    %767 = vmatprep.subr.mxu0 0.0
    %768 = vmatpush1.msra.mxu0 0.0
    %769 = vmatprep.subr.mxu0 0.0
    %770 = vmatpush1.msra.mxu0 0.0
    %771 = vmatprep.subr.mxu0 0.0
    %772 = vmatpush1.msra.mxu0 0.0
    %773 = vmatprep.subr.mxu0 0.0
    %774 = vmatpush1.msra.mxu0 0.0
    %775 = vmatprep.subr.mxu0 0.0
    %776 = vmatpush1.msra.mxu0 0.0
    %777 = vmatprep.subr.mxu0 0.0
    %778 = vmatpush1.msra.mxu0 0.0
    %779 = vmatprep.subr.mxu0 0.0
    %780 = vmatpush1.msra.mxu0 0.0
    %781 = vmatprep.subr.mxu0 0.0
    %782 = vmatpush1.msra.mxu0 0.0
    %783 = vmatprep.subr.mxu0 0.0
    %784 = vmatpush1.msra.mxu0 0.0
    %785 = vmatprep.subr.mxu0 0.0
    %786 = vmatpush1.msra.mxu0 0.0
    %787 = vmatprep.subr.mxu0 0.0
    %788 = vmatpush1.msra.mxu0 0.0
    %789 = vmatprep.subr.mxu0 0.0
    %790 = vmatpush1.msra.mxu0 0.0
    %791 = vmatprep.subr.mxu0 0.0
    %792 = vmatpush1.msra.mxu0 0.0
    %793 = vmatprep.subr.mxu0 0.0
    %794 = vmatpush1.msra.mxu0 0.0
    %795 = vmatprep.subr.mxu0 0.0
    %796 = vmatpush1.msra.mxu0 0.0
    %797 = vmatprep.subr.mxu0 0.0
    %798 = vmatpush1.msra.mxu0 0.0
    %799 = vmatprep.subr.mxu0 0.0
    %800 = vmatpush1.msra.mxu0 0.0
    %801 = vmatprep.subr.mxu0 0.0
    %802 = vmatpush1.msra.mxu0 0.0
    %803 = vmatprep.subr.mxu0 0.0
    %804 = vmatpush1.msra.mxu0 0.0
    %805 = vmatprep.subr.mxu0 0.0
    %806 = vmatpush1.msra.mxu0 0.0
    %807 = vmatprep.subr.mxu0 0.0
    %808 = vmatpush1.msra.mxu0 0.0
    %809 = vmatprep.subr.mxu0 0.0
    %810 = vmatpush1.msra.mxu0 0.0
    %811 = vmatprep.mubr.f32.mxu0 0.0
    %812 = vmatmul.mubr.f32.gmra.mrb[0].mxu0 %v745
    %v813 = vpop.f32.mrb[0].mxu0
    %v814 = vadd.f32 0.0, %v813
    %v815 = vpop.f32.mrb[0].mxu0
    %816 = vdwg.mxu0
    %v817 = vadd.f32 %v159, %v814
    %v818 = vtanh.pop %v817
    %v819 = vmul.f32 %v818, 0.5
    %v820 = vadd.f32 %v819, 0.5
    %v821 = vmul.f32 %v820, %v735
    %823 = vrot.lane.b32.xlu0 %v818, 64
    %v824 = vpop.permute.xlu0 %823
    %v826 = vmul.f32 %v820, %v824
    %828 = vrot.lane.b32.xlu0 %v826, 32
    %v829 = vpop.permute.xlu0 %828
    %v831 = vadd.f32 %v821, %v829
    %v832 = vtanh.pop %v831
    %834 = vrot.lane.b32.xlu0 %v832, 64
    %v835 = vpop.permute.xlu0 %834
    %v837 = vmul.f32 %v820, %v835
    %839 = vrot.lane.b32.xlu0 %v837, 32
    %v840 = vpop.permute.xlu0 %839
    %v841 = vsel %vm167, %v840, 0
    %843 = vmatprep.subr.mxu0 0.0
    %844 = vmatpush1.msra.mxu0 %v25
    %845 = vmatprep.subr.mxu0 0.0
    %846 = vmatpush1.msra.mxu0 %v26
    %847 = vmatprep.subr.mxu0 0.0
    %848 = vmatpush1.msra.mxu0 %v27
    %849 = vmatprep.subr.mxu0 0.0
    %850 = vmatpush1.msra.mxu0 %v28
    %851 = vmatprep.subr.mxu0 0.0
    %852 = vmatpush1.msra.mxu0 0.0
    %853 = vmatprep.subr.mxu0 0.0
    %854 = vmatpush1.msra.mxu0 0.0
    %855 = vmatprep.subr.mxu0 0.0
    %856 = vmatpush1.msra.mxu0 0.0
    %857 = vmatprep.subr.mxu0 0.0
    %858 = vmatpush1.msra.mxu0 0.0
    %859 = vmatprep.subr.mxu0 0.0
    %860 = vmatpush1.msra.mxu0 0.0
    %861 = vmatprep.subr.mxu0 0.0
    %862 = vmatpush1.msra.mxu0 0.0
    %863 = vmatprep.subr.mxu0 0.0
    %864 = vmatpush1.msra.mxu0 0.0
    %865 = vmatprep.subr.mxu0 0.0
    %866 = vmatpush1.msra.mxu0 0.0
    %867 = vmatprep.subr.mxu0 0.0
    %868 = vmatpush1.msra.mxu0 0.0
    %869 = vmatprep.subr.mxu0 0.0
    %870 = vmatpush1.msra.mxu0 0.0
    %871 = vmatprep.subr.mxu0 0.0
    %872 = vmatpush1.msra.mxu0 0.0
    %873 = vmatprep.subr.mxu0 0.0
    %874 = vmatpush1.msra.mxu0 0.0
    %875 = vmatprep.subr.mxu0 0.0
    %876 = vmatpush1.msra.mxu0 0.0
    %877 = vmatprep.subr.mxu0 0.0
    %878 = vmatpush1.msra.mxu0 0.0
    %879 = vmatprep.subr.mxu0 0.0
    %880 = vmatpush1.msra.mxu0 0.0
    %881 = vmatprep.subr.mxu0 0.0
    %882 = vmatpush1.msra.mxu0 0.0
    %883 = vmatprep.subr.mxu0 0.0
    %884 = vmatpush1.msra.mxu0 0.0
    %885 = vmatprep.subr.mxu0 0.0
    %886 = vmatpush1.msra.mxu0 0.0
    %887 = vmatprep.subr.mxu0 0.0
    %888 = vmatpush1.msra.mxu0 0.0
    %889 = vmatprep.subr.mxu0 0.0
    %890 = vmatpush1.msra.mxu0 0.0
    %891 = vmatprep.subr.mxu0 0.0
    %892 = vmatpush1.msra.mxu0 0.0
    %893 = vmatprep.subr.mxu0 0.0
    %894 = vmatpush1.msra.mxu0 0.0
    %895 = vmatprep.subr.mxu0 0.0
    %896 = vmatpush1.msra.mxu0 0.0
    %897 = vmatprep.subr.mxu0 0.0
    %898 = vmatpush1.msra.mxu0 0.0
    %899 = vmatprep.subr.mxu0 0.0
    %900 = vmatpush1.msra.mxu0 0.0
    %901 = vmatprep.subr.mxu0 0.0
    %902 = vmatpush1.msra.mxu0 0.0
    %903 = vmatprep.subr.mxu0 0.0
    %904 = vmatpush1.msra.mxu0 0.0
    %905 = vmatprep.subr.mxu0 0.0
    %906 = vmatpush1.msra.mxu0 0.0
    %907 = vmatprep.mubr.f32.mxu0 0.0
    %908 = vmatmul.mubr.f32.gmra.mrb[0].mxu0 %v841
    %v909 = vpop.f32.mrb[0].mxu0
    %v910 = vadd.f32 0.0, %v909
    %v911 = vpop.f32.mrb[0].mxu0
    %912 = vdwg.mxu0
    %v913 = vadd.f32 %v164, %v910
    %v914 = vtanh.pop %v913
    %v915 = vmul.f32 %v914, 0.5
    %v916 = vadd.f32 %v915, 0.5
    %v917 = vmul.f32 %v916, %v831
    %919 = vrot.lane.b32.xlu0 %v914, 64
    %v920 = vpop.permute.xlu0 %919
    %v922 = vmul.f32 %v916, %v920
    %924 = vrot.lane.b32.xlu0 %v922, 32
    %v925 = vpop.permute.xlu0 %924
    %v927 = vadd.f32 %v917, %v925
    %v928 = vtanh.pop %v927
    %930 = vrot.lane.b32.xlu0 %v928, 64
    %v931 = vpop.permute.xlu0 %930
    %v933 = vmul.f32 %v916, %v931
    %v934 = vld [vmem:[%s3] sm:$0xff]
    %v935 = vld [vmem:[%s3 + $0x8] sm:$0xff]
    %v936 = vld [vmem:[%s3 + $0x10] sm:$0xff]
    %v937 = vld [vmem:[%s3 + $0x18] sm:$0xff]
    %v938 = vld [vmem:[%s3 + $0x20] sm:$0xff]
    %v939 = vld [vmem:[%s3 + $0x28] sm:$0xff]
    %v940 = vld [vmem:[%s3 + $0x30] sm:$0xff]
    %v941 = vld [vmem:[%s3 + $0x38] sm:$0xff]
    %v942 = vld [vmem:[%s3 + $0x40] sm:$0xff]
    %v943 = vld [vmem:[%s3 + $0x48] sm:$0xff]
    %v944 = vld [vmem:[%s3 + $0x50] sm:$0xff]
    %v945 = vld [vmem:[%s3 + $0x58] sm:$0xff]
    %v946 = vld [vmem:[%s4] sm:$0xff]
    %v947 = vld [vmem:[%s4 + $0x8] sm:$0xff]
    %v948 = vld [vmem:[%s4 + $0x10] sm:$0xff]
    %v949 = vld [vmem:[%s5] sm:$0xff]
    %v950 = vld [vmem:[%s5 + $0x8] sm:$0xff]
    %v951 = vld [vmem:[%s5 + $0x10] sm:$0xff]
    %v952 = vld [vmem:[%s5 + $0x18] sm:$0xff]
    %v953 = vld [vmem:[%s5 + $0x20] sm:$0xff]
    %v954 = vld [vmem:[%s1] sm:$0xff]
    %956 = vrot.lane.b32.xlu0 %v933, 32
    %v957 = vpop.permute.xlu0 %956
    %v958 = vsel %vm167, %v957, 0
    %960 = vmatprep.subr.mxu0 0.0
    %961 = vmatpush1.msra.mxu0 %v941
    %962 = vmatprep.subr.mxu0 0.0
    %963 = vmatpush1.msra.mxu0 %v942
    %964 = vmatprep.subr.mxu0 0.0
    %965 = vmatpush1.msra.mxu0 %v943
    %966 = vmatprep.subr.mxu0 0.0
    %967 = vmatpush1.msra.mxu0 %v944
    %968 = vmatprep.subr.mxu0 0.0
    %969 = vmatpush1.msra.mxu0 0.0
    %970 = vmatprep.subr.mxu0 0.0
    %971 = vmatpush1.msra.mxu0 0.0
    %972 = vmatprep.subr.mxu0 0.0
    %973 = vmatpush1.msra.mxu0 0.0
    %974 = vmatprep.subr.mxu0 0.0
    %975 = vmatpush1.msra.mxu0 0.0
    %976 = vmatprep.subr.mxu0 0.0
    %977 = vmatpush1.msra.mxu0 0.0
    %978 = vmatprep.subr.mxu0 0.0
    %979 = vmatpush1.msra.mxu0 0.0
    %980 = vmatprep.subr.mxu0 0.0
    %981 = vmatpush1.msra.mxu0 0.0
    %982 = vmatprep.subr.mxu0 0.0
    %983 = vmatpush1.msra.mxu0 0.0
    %984 = vmatprep.subr.mxu0 0.0
    %985 = vmatpush1.msra.mxu0 0.0
    %986 = vmatprep.subr.mxu0 0.0
    %987 = vmatpush1.msra.mxu0 0.0
    %988 = vmatprep.subr.mxu0 0.0
    %989 = vmatpush1.msra.mxu0 0.0
    %990 = vmatprep.subr.mxu0 0.0
    %991 = vmatpush1.msra.mxu0 0.0
    %992 = vmatprep.subr.mxu0 0.0
    %993 = vmatpush1.msra.mxu0 0.0
    %994 = vmatprep.subr.mxu0 0.0
    %995 = vmatpush1.msra.mxu0 0.0
    %996 = vmatprep.subr.mxu0 0.0
    %997 = vmatpush1.msra.mxu0 0.0
    %998 = vmatprep.subr.mxu0 0.0
    %999 = vmatpush1.msra.mxu0 0.0
    %1000 = vmatprep.subr.mxu0 0.0
    %1001 = vmatpush1.msra.mxu0 0.0
    %1002 = vmatprep.subr.mxu0 0.0
    %1003 = vmatpush1.msra.mxu0 0.0
    %1004 = vmatprep.subr.mxu0 0.0
    %1005 = vmatpush1.msra.mxu0 0.0
    %1006 = vmatprep.subr.mxu0 0.0
    %1007 = vmatpush1.msra.mxu0 0.0
    %1008 = vmatprep.subr.mxu0 0.0
    %1009 = vmatpush1.msra.mxu0 0.0
    %1010 = vmatprep.subr.mxu0 0.0
    %1011 = vmatpush1.msra.mxu0 0.0
    %1012 = vmatprep.subr.mxu0 0.0
    %1013 = vmatpush1.msra.mxu0 0.0
    %1014 = vmatprep.subr.mxu0 0.0
    %1015 = vmatpush1.msra.mxu0 0.0
    %1016 = vmatprep.subr.mxu0 0.0
    %1017 = vmatpush1.msra.mxu0 0.0
    %1018 = vmatprep.subr.mxu0 0.0
    %1019 = vmatpush1.msra.mxu0 0.0
    %1020 = vmatprep.subr.mxu0 0.0
    %1021 = vmatpush1.msra.mxu0 0.0
    %1022 = vmatprep.subr.mxu0 0.0
    %1023 = vmatpush1.msra.mxu0 0.0
    %1024 = vmatprep.mubr.f32.mxu0 0.0
    %1025 = vmatmul.mubr.f32.gmra.mrb[0].mxu0 %v958
    %v1026 = vpop.f32.mrb[0].mxu0
    %v1027 = vadd.f32 0.0, %v1026
    %v1028 = vpop.f32.mrb[0].mxu0
    %1029 = vdwg.mxu0
    %vm1030 = vcmask 457728
    %v1032 = vsel %vm1030, %v954, 0
    %1034 = vmatprep.subr.mxu0 0.0
    %1035 = vmatpush1.msra.mxu0 %v934
    %1036 = vmatprep.subr.mxu0 0.0
    %1037 = vmatpush1.msra.mxu0 %v935
    %1038 = vmatprep.subr.mxu0 0.0
    %1039 = vmatpush1.msra.mxu0 %v936
    %1040 = vmatprep.subr.mxu0 0.0
    %1041 = vmatpush1.msra.mxu0 %v937
    %1042 = vmatprep.subr.mxu0 0.0
    %1043 = vmatpush1.msra.mxu0 %v938
    %1044 = vmatprep.subr.mxu0 0.0
    %1045 = vmatpush1.msra.mxu0 %v939
    %1046 = vmatprep.subr.mxu0 0.0
    %1047 = vmatpush1.msra.mxu0 %v940
    %1048 = vmatprep.subr.mxu0 0.0
    %1049 = vmatpush1.msra.mxu0 0.0
    %1050 = vmatprep.subr.mxu0 0.0
    %1051 = vmatpush1.msra.mxu0 0.0
    %1052 = vmatprep.subr.mxu0 0.0
    %1053 = vmatpush1.msra.mxu0 0.0
    %1054 = vmatprep.subr.mxu0 0.0
    %1055 = vmatpush1.msra.mxu0 0.0
    %1056 = vmatprep.subr.mxu0 0.0
    %1057 = vmatpush1.msra.mxu0 0.0
    %1058 = vmatprep.subr.mxu0 0.0
    %1059 = vmatpush1.msra.mxu0 0.0
    %1060 = vmatprep.subr.mxu0 0.0
    %1061 = vmatpush1.msra.mxu0 0.0
    %1062 = vmatprep.subr.mxu0 0.0
    %1063 = vmatpush1.msra.mxu0 0.0
    %1064 = vmatprep.subr.mxu0 0.0
    %1065 = vmatpush1.msra.mxu0 0.0
    %1066 = vmatprep.subr.mxu0 0.0
    %1067 = vmatpush1.msra.mxu0 0.0
    %1068 = vmatprep.subr.mxu0 0.0
    %1069 = vmatpush1.msra.mxu0 0.0
    %1070 = vmatprep.subr.mxu0 0.0
    %1071 = vmatpush1.msra.mxu0 0.0
    %1072 = vmatprep.subr.mxu0 0.0
    %1073 = vmatpush1.msra.mxu0 0.0
    %1074 = vmatprep.subr.mxu0 0.0
    %1075 = vmatpush1.msra.mxu0 0.0
    %1076 = vmatprep.subr.mxu0 0.0
    %1077 = vmatpush1.msra.mxu0 0.0
    %1078 = vmatprep.subr.mxu0 0.0
    %1079 = vmatpush1.msra.mxu0 0.0
    %1080 = vmatprep.subr.mxu0 0.0
    %1081 = vmatpush1.msra.mxu0 0.0
    %1082 = vmatprep.subr.mxu0 0.0
    %1083 = vmatpush1.msra.mxu0 0.0
    %1084 = vmatprep.subr.mxu0 0.0
    %1085 = vmatpush1.msra.mxu0 0.0
    %1086 = vmatprep.subr.mxu0 0.0
    %1087 = vmatpush1.msra.mxu0 0.0
    %1088 = vmatprep.subr.mxu0 0.0
    %1089 = vmatpush1.msra.mxu0 0.0
    %1090 = vmatprep.subr.mxu0 0.0
    %1091 = vmatpush1.msra.mxu0 0.0
    %1092 = vmatprep.subr.mxu0 0.0
    %1093 = vmatpush1.msra.mxu0 0.0
    %1094 = vmatprep.subr.mxu0 0.0
    %1095 = vmatpush1.msra.mxu0 0.0
    %1096 = vmatprep.subr.mxu0 0.0
    %1097 = vmatpush1.msra.mxu0 0.0
    %1098 = vmatprep.mubr.f32.mxu0 0.0
    %1099 = vmatmul.mubr.f32.gmra.mrb[0].mxu0 %v1032
    %v1100 = vpop.f32.mrb[0].mxu0
    %v1101 = vadd.f32 %v1027, %v1100
    %v1102 = vpop.f32.mrb[0].mxu0
    %1103 = vdwg.mxu0
    %v1104 = vadd.f32 %v1101, %v945
    %v1105 = vmax.f32 %v1104, 0.0
    %vm1106 = vcmask 130048
    %v1108 = vsel %vm1106, %v1105, 0
    %1110 = vmatprep.subr.mxu0 0.0
    %1111 = vmatpush1.msra.mxu0 %v946
    %1112 = vmatprep.subr.mxu0 0.0
    %1113 = vmatpush1.msra.mxu0 %v947
    %1114 = vmatprep.subr.mxu0 0.0
    %1115 = vmatpush1.msra.mxu0 0.0
    %1116 = vmatprep.subr.mxu0 0.0
    %1117 = vmatpush1.msra.mxu0 0.0
    %1118 = vmatprep.subr.mxu0 0.0
    %1119 = vmatpush1.msra.mxu0 0.0
    %1120 = vmatprep.subr.mxu0 0.0
    %1121 = vmatpush1.msra.mxu0 0.0
    %1122 = vmatprep.subr.mxu0 0.0
    %1123 = vmatpush1.msra.mxu0 0.0
    %1124 = vmatprep.subr.mxu0 0.0
    %1125 = vmatpush1.msra.mxu0 0.0
    %1126 = vmatprep.subr.mxu0 0.0
    %1127 = vmatpush1.msra.mxu0 0.0
    %1128 = vmatprep.subr.mxu0 0.0
    %1129 = vmatpush1.msra.mxu0 0.0
    %1130 = vmatprep.subr.mxu0 0.0
    %1131 = vmatpush1.msra.mxu0 0.0
    %1132 = vmatprep.subr.mxu0 0.0
    %1133 = vmatpush1.msra.mxu0 0.0
    %1134 = vmatprep.subr.mxu0 0.0
    %1135 = vmatpush1.msra.mxu0 0.0
    %1136 = vmatprep.subr.mxu0 0.0
    %1137 = vmatpush1.msra.mxu0 0.0
    %1138 = vmatprep.subr.mxu0 0.0
    %1139 = vmatpush1.msra.mxu0 0.0
    %1140 = vmatprep.subr.mxu0 0.0
    %1141 = vmatpush1.msra.mxu0 0.0
    %1142 = vmatprep.subr.mxu0 0.0
    %1143 = vmatpush1.msra.mxu0 0.0
    %1144 = vmatprep.subr.mxu0 0.0
    %1145 = vmatpush1.msra.mxu0 0.0
    %1146 = vmatprep.subr.mxu0 0.0
    %1147 = vmatpush1.msra.mxu0 0.0
    %1148 = vmatprep.subr.mxu0 0.0
    %1149 = vmatpush1.msra.mxu0 0.0
    %1150 = vmatprep.subr.mxu0 0.0
    %1151 = vmatpush1.msra.mxu0 0.0
    %1152 = vmatprep.subr.mxu0 0.0
    %1153 = vmatpush1.msra.mxu0 0.0
    %1154 = vmatprep.subr.mxu0 0.0
    %1155 = vmatpush1.msra.mxu0 0.0
    %1156 = vmatprep.subr.mxu0 0.0
    %1157 = vmatpush1.msra.mxu0 0.0
    %1158 = vmatprep.subr.mxu0 0.0
    %1159 = vmatpush1.msra.mxu0 0.0
    %1160 = vmatprep.subr.mxu0 0.0
    %1161 = vmatpush1.msra.mxu0 0.0
    %1162 = vmatprep.subr.mxu0 0.0
    %1163 = vmatpush1.msra.mxu0 0.0
    %1164 = vmatprep.subr.mxu0 0.0
    %1165 = vmatpush1.msra.mxu0 0.0
    %1166 = vmatprep.subr.mxu0 0.0
    %1167 = vmatpush1.msra.mxu0 0.0
    %1168 = vmatprep.subr.mxu0 0.0
    %1169 = vmatpush1.msra.mxu0 0.0
    %1170 = vmatprep.subr.mxu0 0.0
    %1171 = vmatpush1.msra.mxu0 0.0
    %1172 = vmatprep.subr.mxu0 0.0
    %1173 = vmatpush1.msra.mxu0 0.0
    %1174 = vmatprep.mubr.f32.mxu0 0.0
    %1175 = vmatmul.mubr.f32.gmra.mrb[0].mxu0 %v1108
    %v1176 = vpop.f32.mrb[0].mxu0
    %v1177 = vadd.f32 %v948, %v1176
    %v1178 = vpop.f32.mrb[0].mxu0
    %1179 = vdwg.mxu0
    %v1180 = vmax.f32 %v1177, 0.0
    %v1182 = vsel %vm167, %v1180, 0
    %1184 = vmatprep.subr.mxu0 0.0
    %1185 = vmatpush1.msra.mxu0 %v949
    %1186 = vmatprep.subr.mxu0 0.0
    %1187 = vmatpush1.msra.mxu0 %v950
    %1188 = vmatprep.subr.mxu0 0.0
    %1189 = vmatpush1.msra.mxu0 %v951
    %1190 = vmatprep.subr.mxu0 0.0
    %1191 = vmatpush1.msra.mxu0 %v952
    %1192 = vmatprep.subr.mxu0 0.0
    %1193 = vmatpush1.msra.mxu0 0.0
    %1194 = vmatprep.subr.mxu0 0.0
    %1195 = vmatpush1.msra.mxu0 0.0
    %1196 = vmatprep.subr.mxu0 0.0
    %1197 = vmatpush1.msra.mxu0 0.0
    %1198 = vmatprep.subr.mxu0 0.0
    %1199 = vmatpush1.msra.mxu0 0.0
    %1200 = vmatprep.subr.mxu0 0.0
    %1201 = vmatpush1.msra.mxu0 0.0
    %1202 = vmatprep.subr.mxu0 0.0
    %1203 = vmatpush1.msra.mxu0 0.0
    %1204 = vmatprep.subr.mxu0 0.0
    %1205 = vmatpush1.msra.mxu0 0.0
    %1206 = vmatprep.subr.mxu0 0.0
    %1207 = vmatpush1.msra.mxu0 0.0
    %1208 = vmatprep.subr.mxu0 0.0
    %1209 = vmatpush1.msra.mxu0 0.0
    %1210 = vmatprep.subr.mxu0 0.0
    %1211 = vmatpush1.msra.mxu0 0.0
    %1212 = vmatprep.subr.mxu0 0.0
    %1213 = vmatpush1.msra.mxu0 0.0
    %1214 = vmatprep.subr.mxu0 0.0
    %1215 = vmatpush1.msra.mxu0 0.0
    %1216 = vmatprep.subr.mxu0 0.0
    %1217 = vmatpush1.msra.mxu0 0.0
    %1218 = vmatprep.subr.mxu0 0.0
    %1219 = vmatpush1.msra.mxu0 0.0
    %1220 = vmatprep.subr.mxu0 0.0
    %1221 = vmatpush1.msra.mxu0 0.0
    %1222 = vmatprep.subr.mxu0 0.0
    %1223 = vmatpush1.msra.mxu0 0.0
    %1224 = vmatprep.subr.mxu0 0.0
    %1225 = vmatpush1.msra.mxu0 0.0
    %1226 = vmatprep.subr.mxu0 0.0
    %1227 = vmatpush1.msra.mxu0 0.0
    %1228 = vmatprep.subr.mxu0 0.0
    %1229 = vmatpush1.msra.mxu0 0.0
    %1230 = vmatprep.subr.mxu0 0.0
    %1231 = vmatpush1.msra.mxu0 0.0
    %1232 = vmatprep.subr.mxu0 0.0
    %1233 = vmatpush1.msra.mxu0 0.0
    %1234 = vmatprep.subr.mxu0 0.0
    %1235 = vmatpush1.msra.mxu0 0.0
    %1236 = vmatprep.subr.mxu0 0.0
    %1237 = vmatpush1.msra.mxu0 0.0
    %1238 = vmatprep.subr.mxu0 0.0
    %1239 = vmatpush1.msra.mxu0 0.0
    %1240 = vmatprep.subr.mxu0 0.0
    %1241 = vmatpush1.msra.mxu0 0.0
    %1242 = vmatprep.subr.mxu0 0.0
    %1243 = vmatpush1.msra.mxu0 0.0
    %1244 = vmatprep.subr.mxu0 0.0
    %1245 = vmatpush1.msra.mxu0 0.0
    %1246 = vmatprep.subr.mxu0 0.0
    %1247 = vmatpush1.msra.mxu0 0.0
    %1248 = vmatprep.mubr.f32.mxu0 0.0
    %1249 = vmatmul.mubr.f32.gmra.mrb[0].mxu0 %v1182
    %v1250 = vpop.f32.mrb[0].mxu0
    %v1251 = vadd.f32 %v953, %v1250
    %v1252 = vpop.f32.mrb[0].mxu0
    %1253 = vdwg.mxu0
    %vm1254 = vcmask 58368
    %1255 = vst.msk [vmem:[#allocation2] sm:$0x3] %vm1254, %v1251
    // Predicated region
    $region26: #{model_lstm_forward.1} parent=1 // pred_check
      _
    $region27: #{model_lstm_forward.1} parent=1 // pred_check_branch
      %1257 = sbr.rel (0) target = $region29
    $region28: #{model_lstm_forward.1} parent=1 // pred_region
      %s1259 = ssub.s32 32, 32
      %1260 = vsyncadd [#allocation3], %s1259
      %s1262 = sshll.u32 [#allocation2], 4
      %s1263 = int_to_ptr.vmem [resolvable:$true] %s1262
      %1265 = dma.vmem_to_hbm [thread:$0]  %s1263, 32, %s6, [#allocation3]
    $region29: #{model_lstm_forward.1} parent=1 // pred_fallthru
      _
    // Predicated region
    $region30: #{model_lstm_forward.1} parent=1 // pred_check
      _
    $region31: #{model_lstm_forward.1} parent=1 // pred_check_branch
      %1267 = sbr.rel (0) target = $region33
    $region32: #{model_lstm_forward.1} parent=1 // pred_region
      %1268 = dma.done [#allocation3], 32
    $region33: #{model_lstm_forward.1} parent=1 // pred_fallthru
      _
    %1269 = vsyncpa [#allocation3], 1

</llo_original>
